<compile_context>
chip_gen: v6e
topology: v6e:2x2x1
jax: 0.10.0
libtpu: 0.0.40
codegen_flags: <defaults>
</compile_context>

<pallas_src>
import math

import numpy as np
import jax
import jax.numpy as jnp
from jax import lax
from jax.experimental import pallas as pl
from jax.experimental.pallas import tpu as pltpu


def _round_up(x, m):
    return ((x + m - 1) // m) * m


def _choose_tb(B, N, D, kv_itemsize, budget_bytes=8 << 20, min_grid_steps=4):
    """Pick the per-grid-step batch tile TB (multiple of 8).

    K and V are each double-buffered by the BlockSpec pipeline (4 tiles of
    (TB, N, D) in flight) plus roughly two f32 tiles of intermediates inside
    the body; keep that under `budget_bytes` so the kernel fits the default
    scoped-VMEM limit on every generation (v5e 16 MiB, v6e 32 MiB, v7x 32 of
    64 MiB physical).  Also keep the grid at least `min_grid_steps` long so
    the "parallel" batch axis can be sharded across v7x's two TensorCores.
    """
    bytes_per_row = 4 * N * D * kv_itemsize + 2 * N * D * 4
    tb_budget = max(1, budget_bytes // bytes_per_row)
    tb_steps = _round_up(max(1, -(-B // min_grid_steps)), 8)
    tb = min(int(tb_budget), 64, tb_steps)
    return max(8, (tb // 8) * 8)


def _gat_dot_rel_kernel(q_ref, k_ref, v_ref, adj_ref, smask_ref,
                        w1_ref, b1_ref, w2_ref, b2_ref, ytab_ref,
                        aw_ref, as_ref):
    f32 = jnp.float32

    q = q_ref[...].astype(f32)        # (TB, D)
    w1 = w1_ref[...].astype(f32)      # (D, D)  nn.Linear weight layout (out, in)
    b1 = b1_ref[...].astype(f32)      # (1, D)
    w2 = w2_ref[...].astype(f32)      # (D, D)
    b2 = b2_ref[...].astype(f32)      # (1, D)

    # Qp = linear1(Q) = Q @ W1.T + b1  (MXU, full f32 precision)     (TB, D)
    qp = lax.dot_general(q, w1, (((1,), (1,)), ((), ())),
                         preferred_element_type=f32,
                         precision=lax.Precision.HIGHEST) + b1
    # Fold linear2 into the query side (exact):
    #   Kp . Qp = (K @ W2.T + b2) . Qp = K . (Qp @ W2) + (b2 . Qp)
    qhat = lax.dot_general(qp, w2, (((1,), (0,)), ((), ())),
                           preferred_element_type=f32,
                           precision=lax.Precision.HIGHEST)          # (TB, D)
    c = jnp.sum(qp * b2, axis=-1, keepdims=True)                     # (TB, 1)

    # y = linear3(rel_emb(s_mask)); s_mask in {0, 1} -> two scalars from SMEM.
    s = smask_ref[...].astype(f32)                                   # (TB, N)
    y0 = ytab_ref[0]
    y1 = ytab_ref[1]
    y = y0 + s * (y1 - y0)                                           # (TB, N)

    # alpha[b, n] = K[b, n, :] . qhat[b, :] + c[b] + y[b, n]
    # Batched mat-vec (M=1) -> exact-f32 VPU multiply + XLU lane reduce,
    # rather than an MXU matmul that would fill one row of the systolic array.
    k = k_ref[...].astype(f32)                                       # (TB, N, D)
    alpha = jnp.sum(k * qhat[:, None, :], axis=-1)                   # (TB, N)
    alpha = alpha + c + y

    # mask_logic: alpha - (1 - adj) * 1e30 (finite in f32, matches reference)
    adj = adj_ref[...].astype(f32)                                   # (TB, N)
    alpha = alpha - (1.0 - adj) * 1e30

    # Softmax over N on a sublane-dense (TB, N) tile; reciprocal starts on the
    # EUP (free slot) and gets one Newton step (VPU) to reach f32 accuracy.
    m = jnp.max(alpha, axis=-1, keepdims=True)
    e = jnp.exp(alpha - m)
    denom = jnp.sum(e, axis=-1, keepdims=True)
    r = pl.reciprocal(denom, approx=True)
    r = r * (2.0 - denom * r)                                        # Newton step
    attn = e * r                                                     # (TB, N)
    aw_ref[...] = attn.astype(aw_ref.dtype)

    # attn_sum[b, d] = sum_n attn[b, n] * V[b, n, d]
    # Again a batched (1, N) x (N, D) product -> VPU multiply + sublane reduce.
    v = v_ref[...].astype(f32)                                       # (TB, N, D)
    asum = jnp.sum(attn[:, :, None] * v, axis=1)                     # (TB, D)
    as_ref[...] = asum.astype(as_ref.dtype)


def gat_dot_rel(Q, K, V, adj, s_mask, w1, b1, w2, b2, w3, b3, rel_emb):
    """Pallas implementation of GatDot_rel.forward.

    Q: (B, D), K/V: (B, N, D), adj: (B, N), s_mask: (B, N) int in {0, 1}.
    w1/b1, w2/b2: nn.Linear(D, D) params; w3/b3: nn.Linear(D, 1) params;
    rel_emb: nn.Embedding(2, D) table.
    Returns (attn_weight (B, 1, N), attn_sum (B, D)), both float32.
    """
    B, N, D = K.shape
    f32 = jnp.float32

    TB = _choose_tb(B, N, D, jnp.dtype(K.dtype).itemsize)
    Bp = _round_up(B, TB)
    if Bp != B:
        pad = Bp - B
        Q = jnp.pad(Q, ((0, pad), (0, 0)))
        K = jnp.pad(K, ((0, pad), (0, 0), (0, 0)))
        V = jnp.pad(V, ((0, pad), (0, 0), (0, 0)))
        adj = jnp.pad(adj, ((0, pad), (0, 0)))
        s_mask = jnp.pad(s_mask, ((0, pad), (0, 0)))

    # Weight-only fold (tiny, data-independent): linear3(Embedding(s)) has only
    # two possible scalar outputs -> a 2-entry table kept in SMEM.  Computed as
    # an exact multiply+sum (no matmul-precision surprises in the wrapper).
    y_table = (jnp.sum(rel_emb.astype(f32) * w3.astype(f32), axis=-1)
               + b3.astype(f32).reshape(())).reshape(2)
    b1_2d = b1.reshape(1, D)
    b2_2d = b2.reshape(1, D)

    grid_spec = pltpu.PrefetchScalarGridSpec(
        num_scalar_prefetch=0,
        grid=(Bp // TB,),
        in_specs=[
            pl.BlockSpec((TB, D), lambda b: (b, 0)),            # Q
            pl.BlockSpec((TB, N, D), lambda b: (b, 0, 0)),      # K (native dtype)
            pl.BlockSpec((TB, N, D), lambda b: (b, 0, 0)),      # V (native dtype)
            pl.BlockSpec((TB, N), lambda b: (b, 0)),            # adj
            pl.BlockSpec((TB, N), lambda b: (b, 0)),            # s_mask
            pl.BlockSpec((D, D), lambda b: (0, 0)),             # W1 (resident)
            pl.BlockSpec((1, D), lambda b: (0, 0)),             # b1
            pl.BlockSpec((D, D), lambda b: (0, 0)),             # W2
            pl.BlockSpec((1, D), lambda b: (0, 0)),             # b2
            pl.BlockSpec(memory_space=pltpu.MemorySpace.SMEM),  # y_table (2,)
        ],
        out_specs=[
            pl.BlockSpec((TB, N), lambda b: (b, 0)),            # attn_weight
            pl.BlockSpec((TB, D), lambda b: (b, 0)),            # attn_sum
        ],
    )

    attn_weight, attn_sum = pl.pallas_call(
        _gat_dot_rel_kernel,
        grid_spec=grid_spec,
        out_shape=(
            jax.ShapeDtypeStruct((Bp, N), f32),
            jax.ShapeDtypeStruct((Bp, D), f32),
        ),
        compiler_params=pltpu.CompilerParams(
            dimension_semantics=("parallel",)),
    )(Q, K, V, adj, s_mask, w1, b1_2d, w2, b2_2d, y_table)

    return attn_weight[:B].reshape(B, 1, N), attn_sum[:B]


def _reference_np(Q, K, V, adj, s_mask, w1, b1, w2, b2, w3, b3, rel_emb):
    """Float64 numpy mirror of the PyTorch forward (no algebraic folds).

    Using numpy avoids TPU default-matmul-precision (bf16) artifacts in the
    reference, which is what tripped the previous correctness check.
    """
    Q = np.asarray(Q, np.float64)
    K = np.asarray(K, np.float64)
    V = np.asarray(V, np.float64)
    adj = np.asarray(adj, np.float64)
    s_mask = np.asarray(s_mask)
    w1 = np.asarray(w1, np.float64); b1 = np.asarray(b1, np.float64)
    w2 = np.asarray(w2, np.float64); b2 = np.asarray(b2, np.float64)
    w3 = np.asarray(w3, np.float64); b3 = np.asarray(b3, np.float64)
    rel_emb = np.asarray(rel_emb, np.float64)

    rel = rel_emb[s_mask]                                      # (B, N, D)
    Qp = Q @ w1.T + b1                                         # (B, D)
    Kp = K @ w2.T + b2                                         # (B, N, D)
    y = rel @ w3.T + b3                                        # (B, N, 1)
    alpha = np.einsum("bnd,bd->bn", Kp, Qp)[:, :, None] + y    # (B, N, 1)
    alpha = np.transpose(alpha, (0, 2, 1))                     # (B, 1, N)
    alpha = alpha - (1.0 - adj[:, None, :]) * 1e30
    alpha = alpha - alpha.max(axis=2, keepdims=True)
    e = np.exp(alpha)
    aw = e / e.sum(axis=2, keepdims=True)
    asum = np.einsum("bon,bnd->bod", aw, V)[:, 0, :]
    return aw.astype(np.float32), asum.astype(np.float32)


if __name__ == "__main__":
    B, N, D = 20, 16, 32   # small shapes: batch=20, context=16, hidden=32
    key = jax.random.PRNGKey(0)
    (kq, kk, kv, ka, ks, kw1, kb1, kw2, kb2, kw3, kb3, ke) = jax.random.split(key, 12)

    Q = jax.random.normal(kq, (B, D), dtype=jnp.float32)
    K = jax.random.normal(kk, (B, N, D), dtype=jnp.float32)
    V = jax.random.normal(kv, (B, N, D), dtype=jnp.float32)
    adj = (jax.random.uniform(ka, (B, N)) > 0.4).astype(jnp.float32)
    adj = adj.at[:, 0].set(1.0)        # at least one neighbour per row
    s_mask = (jax.random.uniform(ks, (B, N)) > 0.5).astype(jnp.int32)

    bound = 1.0 / math.sqrt(D)         # nn.Linear default init bound
    w1 = jax.random.uniform(kw1, (D, D), minval=-bound, maxval=bound, dtype=jnp.float32)
    b1 = jax.random.uniform(kb1, (D,), minval=-bound, maxval=bound, dtype=jnp.float32)
    w2 = jax.random.uniform(kw2, (D, D), minval=-bound, maxval=bound, dtype=jnp.float32)
    b2 = jax.random.uniform(kb2, (D,), minval=-bound, maxval=bound, dtype=jnp.float32)
    w3 = jax.random.uniform(kw3, (1, D), minval=-bound, maxval=bound, dtype=jnp.float32)
    b3 = jax.random.uniform(kb3, (1,), minval=-bound, maxval=bound, dtype=jnp.float32)
    rel_emb = jax.random.normal(ke, (2, D), dtype=jnp.float32)   # nn.Embedding ~ N(0,1)

    attn_weight, attn_sum = gat_dot_rel(Q, K, V, adj, s_mask,
                                        w1, b1, w2, b2, w3, b3, rel_emb)
    jax.block_until_ready((attn_weight, attn_sum))

    ref_aw, ref_as = _reference_np(Q, K, V, adj, s_mask,
                                   w1, b1, w2, b2, w3, b3, rel_emb)
    aw_np = np.asarray(attn_weight)
    as_np = np.asarray(attn_sum)
    assert np.allclose(aw_np, ref_aw, atol=2e-3, rtol=2e-3), \
        float(np.max(np.abs(aw_np - ref_aw)))
    assert np.allclose(as_np, ref_as, atol=2e-3, rtol=2e-3), \
        float(np.max(np.abs(as_np - ref_as)))

    print("KERNEL_OK")
</pallas_src>

<mosaic_0001>
module attributes {stable_mosaic.version = 11 : i64} {
  func.func @_gat_dot_rel_kernel(%arg0: i32, %arg1: memref<8x32xf32, #tpu.memory_space<vmem>>, %arg2: memref<8x16x32xf32, #tpu.memory_space<vmem>>, %arg3: memref<8x16x32xf32, #tpu.memory_space<vmem>>, %arg4: memref<8x16xf32, #tpu.memory_space<vmem>>, %arg5: memref<8x16xi32, #tpu.memory_space<vmem>>, %arg6: memref<32x32xf32, #tpu.memory_space<vmem>>, %arg7: memref<1x32xf32, #tpu.memory_space<vmem>>, %arg8: memref<32x32xf32, #tpu.memory_space<vmem>>, %arg9: memref<1x32xf32, #tpu.memory_space<vmem>>, %arg10: memref<2xf32, #tpu.memory_space<smem>>, %arg11: memref<8x16xf32, #tpu.memory_space<vmem>>, %arg12: memref<8x32xf32, #tpu.memory_space<vmem>>) attributes {dimension_semantics = [#tpu.dimension_semantics<parallel>], iteration_bounds = array<i64: 3>, scalar_prefetch = 0 : i64, scratch_operands = 0 : i64, tpu.core_type = #tpu.core_type<tc>, window_params = [{transform_indices = @transform_0, window_bounds = array<i64: 8, 32>}, {transform_indices = @transform_1, window_bounds = array<i64: 8, 16, 32>}, {transform_indices = @transform_2, window_bounds = array<i64: 8, 16, 32>}, {transform_indices = @transform_3, window_bounds = array<i64: 8, 16>}, {transform_indices = @transform_4, window_bounds = array<i64: 8, 16>}, {pipeline_mode = #tpu.pipeline_mode<synchronous>, transform_indices = @transform_5, window_bounds = array<i64: 32, 32>}, {pipeline_mode = #tpu.pipeline_mode<synchronous>, transform_indices = @transform_6, window_bounds = array<i64: 1, 32>}, {pipeline_mode = #tpu.pipeline_mode<synchronous>, transform_indices = @transform_7, window_bounds = array<i64: 32, 32>}, {pipeline_mode = #tpu.pipeline_mode<synchronous>, transform_indices = @transform_8, window_bounds = array<i64: 1, 32>}, {transform_indices = @transform_9, window_bounds = array<i64: 2>}, {transform_indices = @transform_10, window_bounds = array<i64: 8, 16>}, {transform_indices = @transform_11, window_bounds = array<i64: 8, 32>}]} {
    %c0 = arith.constant 0 : index
    %c0_0 = arith.constant 0 : index
    %0 = vector.load %arg1[%c0, %c0_0] : memref<8x32xf32, #tpu.memory_space<vmem>>, vector<8x32xf32>
    %c0_1 = arith.constant 0 : index
    %c0_2 = arith.constant 0 : index
    %1 = vector.load %arg6[%c0_1, %c0_2] : memref<32x32xf32, #tpu.memory_space<vmem>>, vector<32x32xf32>
    %c0_3 = arith.constant 0 : index
    %c0_4 = arith.constant 0 : index
    %2 = vector.load %arg7[%c0_3, %c0_4] : memref<1x32xf32, #tpu.memory_space<vmem>>, vector<1x32xf32>
    %c0_5 = arith.constant 0 : index
    %c0_6 = arith.constant 0 : index
    %3 = vector.load %arg8[%c0_5, %c0_6] : memref<32x32xf32, #tpu.memory_space<vmem>>, vector<32x32xf32>
    %c0_7 = arith.constant 0 : index
    %c0_8 = arith.constant 0 : index
    %4 = vector.load %arg9[%c0_7, %c0_8] : memref<1x32xf32, #tpu.memory_space<vmem>>, vector<1x32xf32>
    %cst = arith.constant dense<0.000000e+00> : vector<8x32xf32>
    %5 = tpu.matmul %0, %1, %cst {dimension_numbers = #tpu.dot_dimension_numbers<[1], [1], [0], [0], [0, 0, 1, 0], [], []>, precision = #tpu.contract_precision<fp32>} : vector<8x32xf32>, vector<32x32xf32>, vector<8x32xf32> -> vector<8x32xf32>
    %6 = vector.broadcast %2 : vector<1x32xf32> to vector<8x32xf32>
    %7 = arith.addf %5, %6 : vector<8x32xf32>
    %cst_9 = arith.constant dense<0.000000e+00> : vector<8x32xf32>
    %8 = tpu.matmul %7, %3, %cst_9 {dimension_numbers = #tpu.dot_dimension_numbers<[1], [0], [0], [1], [0, 0, 1, 1], [], []>, precision = #tpu.contract_precision<fp32>} : vector<8x32xf32>, vector<32x32xf32>, vector<8x32xf32> -> vector<8x32xf32>
    %9 = vector.broadcast %4 : vector<1x32xf32> to vector<8x32xf32>
    %10 = arith.mulf %7, %9 : vector<8x32xf32>
    %cst_10 = arith.constant dense<0.000000e+00> : vector<8xf32>
    %11 = vector.multi_reduction <add>, %10, %cst_10 [1] : vector<8x32xf32> to vector<8xf32>
    %12 = vector.shape_cast %11 : vector<8xf32> to vector<8x1xf32>
    %c0_11 = arith.constant 0 : index
    %c0_12 = arith.constant 0 : index
    %13 = vector.load %arg5[%c0_11, %c0_12] : memref<8x16xi32, #tpu.memory_space<vmem>>, vector<8x16xi32>
    %14 = arith.sitofp %13 : vector<8x16xi32> to vector<8x16xf32>
    %c0_13 = arith.constant 0 : index
    %15 = memref.load %arg10[%c0_13] : memref<2xf32, #tpu.memory_space<smem>>
    %c1 = arith.constant 1 : index
    %16 = memref.load %arg10[%c1] : memref<2xf32, #tpu.memory_space<smem>>
    %17 = arith.subf %16, %15 : f32
    %18 = vector.broadcast %17 : f32 to vector<8x16xf32>
    %19 = arith.mulf %14, %18 : vector<8x16xf32>
    %20 = vector.broadcast %15 : f32 to vector<8x16xf32>
    %21 = arith.addf %20, %19 : vector<8x16xf32>
    %c0_14 = arith.constant 0 : index
    %c0_15 = arith.constant 0 : index
    %c0_16 = arith.constant 0 : index
    %22 = vector.load %arg2[%c0_14, %c0_15, %c0_16] : memref<8x16x32xf32, #tpu.memory_space<vmem>>, vector<8x16x32xf32>
    %23 = vector.shape_cast %8 : vector<8x32xf32> to vector<8x1x32xf32>
    %24 = vector.broadcast %23 : vector<8x1x32xf32> to vector<8x16x32xf32>
    %25 = arith.mulf %22, %24 : vector<8x16x32xf32>
    %cst_17 = arith.constant dense<0.000000e+00> : vector<8x16xf32>
    %26 = vector.multi_reduction <add>, %25, %cst_17 [2] : vector<8x16x32xf32> to vector<8x16xf32>
    %27 = vector.broadcast %12 : vector<8x1xf32> to vector<8x16xf32>
    %28 = arith.addf %26, %27 : vector<8x16xf32>
    %29 = arith.addf %28, %21 : vector<8x16xf32>
    %c0_18 = arith.constant 0 : index
    %c0_19 = arith.constant 0 : index
    %30 = vector.load %arg4[%c0_18, %c0_19] : memref<8x16xf32, #tpu.memory_space<vmem>>, vector<8x16xf32>
    %cst_20 = arith.constant 1.000000e+00 : f32
    %31 = vector.broadcast %cst_20 : f32 to vector<8x16xf32>
    %32 = arith.subf %31, %30 : vector<8x16xf32>
    %cst_21 = arith.constant 1.000000e+30 : f32
    %33 = vector.broadcast %cst_21 : f32 to vector<8x16xf32>
    %34 = arith.mulf %32, %33 : vector<8x16xf32>
    %35 = arith.subf %29, %34 : vector<8x16xf32>
    %cst_22 = arith.constant dense<0xFF800000> : vector<8xf32>
    %36 = vector.multi_reduction <maximumf>, %35, %cst_22 [1] : vector<8x16xf32> to vector<8xf32>
    %37 = vector.shape_cast %36 : vector<8xf32> to vector<8x1xf32>
    %38 = vector.broadcast %37 : vector<8x1xf32> to vector<8x16xf32>
    %39 = arith.subf %35, %38 : vector<8x16xf32>
    %40 = math.exp %39 : vector<8x16xf32>
    %cst_23 = arith.constant dense<0.000000e+00> : vector<8xf32>
    %41 = vector.multi_reduction <add>, %40, %cst_23 [1] : vector<8x16xf32> to vector<8xf32>
    %42 = vector.shape_cast %41 : vector<8xf32> to vector<8x1xf32>
    %43 = tpu.reciprocal %42 {approx = true} : vector<8x1xf32> -> vector<8x1xf32>
    %44 = arith.mulf %42, %43 : vector<8x1xf32>
    %cst_24 = arith.constant 2.000000e+00 : f32
    %45 = vector.broadcast %cst_24 : f32 to vector<8x1xf32>
    %46 = arith.subf %45, %44 : vector<8x1xf32>
    %47 = arith.mulf %43, %46 : vector<8x1xf32>
    %48 = vector.broadcast %47 : vector<8x1xf32> to vector<8x16xf32>
    %49 = arith.mulf %40, %48 : vector<8x16xf32>
    %c0_25 = arith.constant 0 : index
    %c0_26 = arith.constant 0 : index
    %50 = vector.load %arg11[%c0_25, %c0_26] : memref<8x16xf32, #tpu.memory_space<vmem>>, vector<8x16xf32>
    tpu.vector_store %arg11[%c0_25, %c0_26], %49 {strides = array<i32>} : memref<8x16xf32, #tpu.memory_space<vmem>>, vector<8x16xf32>,
    %c0_27 = arith.constant 0 : index
    %c0_28 = arith.constant 0 : index
    %c0_29 = arith.constant 0 : index
    %51 = vector.load %arg3[%c0_27, %c0_28, %c0_29] : memref<8x16x32xf32, #tpu.memory_space<vmem>>, vector<8x16x32xf32>
    %52 = vector.shape_cast %49 : vector<8x16xf32> to vector<8x16x1xf32>
    %53 = vector.broadcast %52 : vector<8x16x1xf32> to vector<8x16x32xf32>
    %54 = arith.mulf %53, %51 : vector<8x16x32xf32>
    %cst_30 = arith.constant dense<0.000000e+00> : vector<8x32xf32>
    %55 = vector.multi_reduction <add>, %54, %cst_30 [1] : vector<8x16x32xf32> to vector<8x32xf32>
    %c0_31 = arith.constant 0 : index
    %c0_32 = arith.constant 0 : index
    %56 = vector.load %arg12[%c0_31, %c0_32] : memref<8x32xf32, #tpu.memory_space<vmem>>, vector<8x32xf32>
    tpu.vector_store %arg12[%c0_31, %c0_32], %55 {strides = array<i32>} : memref<8x32xf32, #tpu.memory_space<vmem>>, vector<8x32xf32>,
    return
  }
  func.func @transform_0(%arg0: i32) -> (i32, i32) {
    %c0_i32 = arith.constant 0 : i32
    %c0_i32_0 = arith.constant 0 : i32
    return %arg0, %c0_i32 : i32, i32
  }
  func.func @transform_1(%arg0: i32) -> (i32, i32, i32) {
    %c0_i32 = arith.constant 0 : i32
    %c0_i32_0 = arith.constant 0 : i32
    %c0_i32_1 = arith.constant 0 : i32
    return %arg0, %c0_i32, %c0_i32_0 : i32, i32, i32
  }
  func.func @transform_2(%arg0: i32) -> (i32, i32, i32) {
    %c0_i32 = arith.constant 0 : i32
    %c0_i32_0 = arith.constant 0 : i32
    %c0_i32_1 = arith.constant 0 : i32
    return %arg0, %c0_i32, %c0_i32_0 : i32, i32, i32
  }
  func.func @transform_3(%arg0: i32) -> (i32, i32) {
    %c0_i32 = arith.constant 0 : i32
    %c0_i32_0 = arith.constant 0 : i32
    return %arg0, %c0_i32 : i32, i32
  }
  func.func @transform_4(%arg0: i32) -> (i32, i32) {
    %c0_i32 = arith.constant 0 : i32
    %c0_i32_0 = arith.constant 0 : i32
    return %arg0, %c0_i32 : i32, i32
  }
  func.func @transform_5(%arg0: i32) -> (i32, i32) {
    %c0_i32 = arith.constant 0 : i32
    %c0_i32_0 = arith.constant 0 : i32
    %c0_i32_1 = arith.constant 0 : i32
    return %c0_i32, %c0_i32_0 : i32, i32
  }
  func.func @transform_6(%arg0: i32) -> (i32, i32) {
    %c0_i32 = arith.constant 0 : i32
    %c0_i32_0 = arith.constant 0 : i32
    %c0_i32_1 = arith.constant 0 : i32
    return %c0_i32, %c0_i32_0 : i32, i32
  }
  func.func @transform_7(%arg0: i32) -> (i32, i32) {
    %c0_i32 = arith.constant 0 : i32
    %c0_i32_0 = arith.constant 0 : i32
    %c0_i32_1 = arith.constant 0 : i32
    return %c0_i32, %c0_i32_0 : i32, i32
  }
  func.func @transform_8(%arg0: i32) -> (i32, i32) {
    %c0_i32 = arith.constant 0 : i32
    %c0_i32_0 = arith.constant 0 : i32
    %c0_i32_1 = arith.constant 0 : i32
    return %c0_i32, %c0_i32_0 : i32, i32
  }
  func.func @transform_9(%arg0: i32) -> i32 {
    %c0_i32 = arith.constant 0 : i32
    %c0_i32_0 = arith.constant 0 : i32
    return %c0_i32 : i32
  }
  func.func @transform_10(%arg0: i32) -> (i32, i32) {
    %c0_i32 = arith.constant 0 : i32
    %c0_i32_0 = arith.constant 0 : i32
    return %arg0, %c0_i32 : i32, i32
  }
  func.func @transform_11(%arg0: i32) -> (i32, i32) {
    %c0_i32 = arith.constant 0 : i32
    %c0_i32_0 = arith.constant 0 : i32
    return %arg0, %c0_i32 : i32, i32
  }
}

</mosaic_0001>

<llo_original>
// kernel: tpu_custom_call.1
$region0: #{tpu_custom_call.1}
  #allocation0 [shape = 'u32[]', space=smem, size = 0x4, offset = 0x4, fixed_abs, tag = 'smem constant byte address 0x4 - core index']
  #allocation1 [shape = 'u32[144,128]{1,0:T(1,128)}', space=vmem, size = 0x12000, scoped, tag = 'internal scratch']
  %s0 = inlined_call_operand.hbm [shape: f32[24,32], index: 0, kind: input, shape index: {}]
  %s1 = inlined_call_operand.hbm [shape: f32[24,16,32], index: 1, kind: input, shape index: {}]
  %s2 = inlined_call_operand.hbm [shape: f32[24,16,32], index: 2, kind: input, shape index: {}]
  %s3 = inlined_call_operand.vmem [shape: f32[24,16], index: 3, kind: input, shape index: {}]
  %s4 = inlined_call_operand.vmem [shape: s32[24,16], index: 4, kind: input, shape index: {}]
  %s5 = inlined_call_operand.vmem [shape: f32[32,32], index: 5, kind: input, shape index: {}]
  %s6 = inlined_call_operand.vmem [shape: f32[1,32], index: 6, kind: input, shape index: {}]
  %s7 = inlined_call_operand.vmem [shape: f32[32,32], index: 7, kind: input, shape index: {}]
  %s8 = inlined_call_operand.vmem [shape: f32[1,32], index: 8, kind: input, shape index: {}]
  %s9 = inlined_call_operand.vmem [shape: f32[2], index: 9, kind: input, shape index: {}]
  %s10 = inlined_call_operand.vmem [shape: f32[24,16], index: 10, kind: output, shape index: {0}]
  %s11 = inlined_call_operand.hbm [shape: f32[24,32], index: 11, kind: output, shape index: {1}]
  %12 = xla_tuple %s10, %s11
  %s13 = sld [smem:[#allocation0]]
  $region97: #{tpu_custom_call.1} parent=0
    _
  %s15 = ssub.s32 1, %s13
  %s16 = scalar_select 0, %s15, %s13
  $region1: #{tpu_custom_call.1} parent=0
    #allocation2 [shape = 'u8[8192]{0}', space=vmem, size = 0x2000, scoped, tag = 'input window, operand 0']
    #allocation3 [shape = 's32[2]{0}', space=sflag, size = 0x8, scoped, tag = 'scoped memory for tpu_custom_call.1']
    #allocation4 [shape = 's32[2]{0}', space=sflag, size = 0x8, scoped, tag = 'scoped memory for tpu_custom_call.1']
    #allocation5 [shape = 's32[2]{0}', space=sflag, size = 0x8, scoped, tag = 'scoped memory for tpu_custom_call.1']
    #allocation6 [shape = 'u8[131072]{0}', space=vmem, size = 0x20000, scoped, tag = 'input window, operand 1']
    #allocation7 [shape = 's32[2]{0}', space=sflag, size = 0x8, scoped, tag = 'scoped memory for tpu_custom_call.1']
    #allocation8 [shape = 'u8[131072]{0}', space=vmem, size = 0x20000, scoped, tag = 'input window, operand 2']
    #allocation9 [shape = 'u8[512]{0}', space=smem, size = 0x200, scoped, tag = 'input window, operand 9, single buffered']
    #allocation10 [shape = 'u8[8192]{0}', space=vmem, size = 0x2000, scoped, tag = 'output window, operand 1']
    %17 = vsyncpa [#allocation3], 0
    %s18 = scalar_lea.sflag [#allocation3], 1
    %19 = vsyncpa %s18, 0
    %20 = vsyncpa [#allocation7], 0
    %s21 = scalar_lea.sflag [#allocation7], 1
    %22 = vsyncpa %s21, 0
    %23 = vsyncpa [#allocation5], 0
    %24 = vsyncpa [#allocation4], 0
    %s25 = scalar_lea.sflag [#allocation4], 1
    %26 = vsyncpa %s25, 0
    loop: start=0, step=1, limit=5
    $region2: #{tpu_custom_call.1} parent=1 // loop_pre_header
      _
    $region3: #{tpu_custom_call.1} parent=1 // loop_header
      %s28 = sphi 0, %s32
      %p29 = scmp.ge.s32.totalorder %s28, 5
      %s38 = sphi 0, %s40
      %s41 = sphi 0, %s38
      %s42 = sphi 0, %s41
      %s58 = sphi 0, %s42
      %s64 = sphi 0, %s66
      %s67 = sphi 0, %s64
      %s68 = sphi 0, %s67
      %s84 = sphi 0, %s68
      %s90 = sphi 0, %s92
      %s93 = sphi 0, %s90
      %s94 = sphi 0, %s93
      %s110 = sphi 0, %s94
      %s116 = sphi 0, %s118
      %s119 = sphi 0, %s116
      %s120 = sphi 0, %s119
      %s136 = sphi 0, %s120
      %s142 = sphi 0, %s144
      %s145 = sphi 0, %s142
      %s146 = sphi 0, %s145
      %s162 = sphi 0, %s146
      %s166 = sphi 0, %s166
      %s168 = sphi 0, %s166
      %s169 = sphi 0, %s168
      %s183 = sphi 0, %s169
      %s187 = sphi 0, %s187
      %s189 = sphi 0, %s187
      %s190 = sphi 0, %s189
      %s204 = sphi 0, %s190
      %s208 = sphi 0, %s208
      %s210 = sphi 0, %s208
      %s211 = sphi 0, %s210
      %s225 = sphi 0, %s211
      %s229 = sphi 0, %s229
      %s231 = sphi 0, %s229
      %s232 = sphi 0, %s231
      %s246 = sphi 0, %s232
      %s250 = sphi 0, %s250
      %s252 = sphi 0, %s250
      %s253 = sphi 0, %s252
      %s267 = sphi 0, %s253
      %s273 = sphi 0, %s275
      %s276 = sphi 0, %s273
      %s277 = sphi 0, %s276
      %s293 = sphi 0, %s277
      %s299 = sphi 0, %s301
      %s302 = sphi 0, %s299
      %s303 = sphi 0, %s302
      %s319 = sphi 0, %s303
    $region4: #{tpu_custom_call.1} parent=1 // loop_header_branch
      %31 = sbr.rel (%p29) target = $region8
    $region5: #{tpu_custom_call.1} parent=1 // loop_body
      %s33 = ssub.s32 %s28, 1
      %s34 = ssub.s32 %s28, 2
      %s35 = sadd.s32 %s28, 1
      %s36 = ssub.s32 %s28, %s35
      %p37 = scmp.eq.s32.totalorder %s36, 0
      %s39 = sadd.s32 %s38, 1
      %s40 = scalar_select %p37, %s38, %s39
      %p43 = pneg %p37
      %p44 = scmp.eq.s32.totalorder %s28, 2
      %p45 = por %p43, %p44
      %p46 = scmp.ne.s32.totalorder %s38, %s41
      %p47 = scmp.eq.s32.totalorder %s28, 0
      %p48 = por %p46, %p47
      %p49 = scmp.ne.s32.totalorder %s38, %s41
      %p50 = scmp.eq.s32.totalorder %s33, 2
      %p51 = por %p49, %p50
      %p52 = scmp.ne.s32.totalorder %s41, %s42
      %p53 = scmp.eq.s32.totalorder %s33, 0
      %p54 = por %p52, %p53
      %p55 = scmp.ne.s32.totalorder %s41, %s42
      %p56 = scmp.eq.s32.totalorder %s34, 2
      %p57 = por %p55, %p56
      %p59 = scmp.ne.s32.totalorder %s42, %s58
      %p60 = scmp.eq.s32.totalorder %s34, 0
      %p61 = por %p59, %p60
      %s62 = ssub.s32 %s28, %s35
      %p63 = scmp.eq.s32.totalorder %s62, 0
      %s65 = sadd.s32 %s64, 1
      %s66 = scalar_select %p63, %s64, %s65
      %p69 = pneg %p63
      %p70 = scmp.eq.s32.totalorder %s28, 2
      %p71 = por %p69, %p70
      %p72 = scmp.ne.s32.totalorder %s64, %s67
      %p73 = scmp.eq.s32.totalorder %s28, 0
      %p74 = por %p72, %p73
      %p75 = scmp.ne.s32.totalorder %s64, %s67
      %p76 = scmp.eq.s32.totalorder %s33, 2
      %p77 = por %p75, %p76
      %p78 = scmp.ne.s32.totalorder %s67, %s68
      %p79 = scmp.eq.s32.totalorder %s33, 0
      %p80 = por %p78, %p79
      %p81 = scmp.ne.s32.totalorder %s67, %s68
      %p82 = scmp.eq.s32.totalorder %s34, 2
      %p83 = por %p81, %p82
      %p85 = scmp.ne.s32.totalorder %s68, %s84
      %p86 = scmp.eq.s32.totalorder %s34, 0
      %p87 = por %p85, %p86
      %s88 = ssub.s32 %s28, %s35
      %p89 = scmp.eq.s32.totalorder %s88, 0
      %s91 = sadd.s32 %s90, 1
      %s92 = scalar_select %p89, %s90, %s91
      %p95 = pneg %p89
      %p96 = scmp.eq.s32.totalorder %s28, 2
      %p97 = por %p95, %p96
      %p98 = scmp.ne.s32.totalorder %s90, %s93
      %p99 = scmp.eq.s32.totalorder %s28, 0
      %p100 = por %p98, %p99
      %p101 = scmp.ne.s32.totalorder %s90, %s93
      %p102 = scmp.eq.s32.totalorder %s33, 2
      %p103 = por %p101, %p102
      %p104 = scmp.ne.s32.totalorder %s93, %s94
      %p105 = scmp.eq.s32.totalorder %s33, 0
      %p106 = por %p104, %p105
      %p107 = scmp.ne.s32.totalorder %s93, %s94
      %p108 = scmp.eq.s32.totalorder %s34, 2
      %p109 = por %p107, %p108
      %p111 = scmp.ne.s32.totalorder %s94, %s110
      %p112 = scmp.eq.s32.totalorder %s34, 0
      %p113 = por %p111, %p112
      %s114 = ssub.s32 %s28, %s35
      %p115 = scmp.eq.s32.totalorder %s114, 0
      %s117 = sadd.s32 %s116, 1
      %s118 = scalar_select %p115, %s116, %s117
      %p121 = pneg %p115
      %p122 = scmp.eq.s32.totalorder %s28, 2
      %p123 = por %p121, %p122
      %p124 = scmp.ne.s32.totalorder %s116, %s119
      %p125 = scmp.eq.s32.totalorder %s28, 0
      %p126 = por %p124, %p125
      %p127 = scmp.ne.s32.totalorder %s116, %s119
      %p128 = scmp.eq.s32.totalorder %s33, 2
      %p129 = por %p127, %p128
      %p130 = scmp.ne.s32.totalorder %s119, %s120
      %p131 = scmp.eq.s32.totalorder %s33, 0
      %p132 = por %p130, %p131
      %p133 = scmp.ne.s32.totalorder %s119, %s120
      %p134 = scmp.eq.s32.totalorder %s34, 2
      %p135 = por %p133, %p134
      %p137 = scmp.ne.s32.totalorder %s120, %s136
      %p138 = scmp.eq.s32.totalorder %s34, 0
      %p139 = por %p137, %p138
      %s140 = ssub.s32 %s28, %s35
      %p141 = scmp.eq.s32.totalorder %s140, 0
      %s143 = sadd.s32 %s142, 1
      %s144 = scalar_select %p141, %s142, %s143
      %p147 = pneg %p141
      %p148 = scmp.eq.s32.totalorder %s28, 2
      %p149 = por %p147, %p148
      %p150 = scmp.ne.s32.totalorder %s142, %s145
      %p151 = scmp.eq.s32.totalorder %s28, 0
      %p152 = por %p150, %p151
      %p153 = scmp.ne.s32.totalorder %s142, %s145
      %p154 = scmp.eq.s32.totalorder %s33, 2
      %p155 = por %p153, %p154
      %p156 = scmp.ne.s32.totalorder %s145, %s146
      %p157 = scmp.eq.s32.totalorder %s33, 0
      %p158 = por %p156, %p157
      %p159 = scmp.ne.s32.totalorder %s145, %s146
      %p160 = scmp.eq.s32.totalorder %s34, 2
      %p161 = por %p159, %p160
      %p163 = scmp.ne.s32.totalorder %s146, %s162
      %p164 = scmp.eq.s32.totalorder %s34, 0
      %p165 = por %p163, %p164
      %s167 = sadd.s32 %s166, 1
      %p170 = scmp.eq.s32.totalorder %s28, 2
      %p171 = scmp.ne.s32.totalorder %s166, %s168
      %p172 = scmp.eq.s32.totalorder %s28, 0
      %p173 = por %p171, %p172
      %p174 = scmp.ne.s32.totalorder %s166, %s168
      %p175 = scmp.eq.s32.totalorder %s33, 2
      %p176 = por %p174, %p175
      %p177 = scmp.ne.s32.totalorder %s168, %s169
      %p178 = scmp.eq.s32.totalorder %s33, 0
      %p179 = por %p177, %p178
      %p180 = scmp.ne.s32.totalorder %s168, %s169
      %p181 = scmp.eq.s32.totalorder %s34, 2
      %p182 = por %p180, %p181
      %p184 = scmp.ne.s32.totalorder %s169, %s183
      %p185 = scmp.eq.s32.totalorder %s34, 0
      %p186 = por %p184, %p185
      %s188 = sadd.s32 %s187, 1
      %p191 = scmp.eq.s32.totalorder %s28, 2
      %p192 = scmp.ne.s32.totalorder %s187, %s189
      %p193 = scmp.eq.s32.totalorder %s28, 0
      %p194 = por %p192, %p193
      %p195 = scmp.ne.s32.totalorder %s187, %s189
      %p196 = scmp.eq.s32.totalorder %s33, 2
      %p197 = por %p195, %p196
      %p198 = scmp.ne.s32.totalorder %s189, %s190
      %p199 = scmp.eq.s32.totalorder %s33, 0
      %p200 = por %p198, %p199
      %p201 = scmp.ne.s32.totalorder %s189, %s190
      %p202 = scmp.eq.s32.totalorder %s34, 2
      %p203 = por %p201, %p202
      %p205 = scmp.ne.s32.totalorder %s190, %s204
      %p206 = scmp.eq.s32.totalorder %s34, 0
      %p207 = por %p205, %p206
      %s209 = sadd.s32 %s208, 1
      %p212 = scmp.eq.s32.totalorder %s28, 2
      %p213 = scmp.ne.s32.totalorder %s208, %s210
      %p214 = scmp.eq.s32.totalorder %s28, 0
      %p215 = por %p213, %p214
      %p216 = scmp.ne.s32.totalorder %s208, %s210
      %p217 = scmp.eq.s32.totalorder %s33, 2
      %p218 = por %p216, %p217
      %p219 = scmp.ne.s32.totalorder %s210, %s211
      %p220 = scmp.eq.s32.totalorder %s33, 0
      %p221 = por %p219, %p220
      %p222 = scmp.ne.s32.totalorder %s210, %s211
      %p223 = scmp.eq.s32.totalorder %s34, 2
      %p224 = por %p222, %p223
      %p226 = scmp.ne.s32.totalorder %s211, %s225
      %p227 = scmp.eq.s32.totalorder %s34, 0
      %p228 = por %p226, %p227
      %s230 = sadd.s32 %s229, 1
      %p233 = scmp.eq.s32.totalorder %s28, 2
      %p234 = scmp.ne.s32.totalorder %s229, %s231
      %p235 = scmp.eq.s32.totalorder %s28, 0
      %p236 = por %p234, %p235
      %p237 = scmp.ne.s32.totalorder %s229, %s231
      %p238 = scmp.eq.s32.totalorder %s33, 2
      %p239 = por %p237, %p238
      %p240 = scmp.ne.s32.totalorder %s231, %s232
      %p241 = scmp.eq.s32.totalorder %s33, 0
      %p242 = por %p240, %p241
      %p243 = scmp.ne.s32.totalorder %s231, %s232
      %p244 = scmp.eq.s32.totalorder %s34, 2
      %p245 = por %p243, %p244
      %p247 = scmp.ne.s32.totalorder %s232, %s246
      %p248 = scmp.eq.s32.totalorder %s34, 0
      %p249 = por %p247, %p248
      %s251 = sadd.s32 %s250, 1
      %p254 = scmp.eq.s32.totalorder %s28, 2
      %p255 = scmp.ne.s32.totalorder %s250, %s252
      %p256 = scmp.eq.s32.totalorder %s28, 0
      %p257 = por %p255, %p256
      %p258 = scmp.ne.s32.totalorder %s250, %s252
      %p259 = scmp.eq.s32.totalorder %s33, 2
      %p260 = por %p258, %p259
      %p261 = scmp.ne.s32.totalorder %s252, %s253
      %p262 = scmp.eq.s32.totalorder %s33, 0
      %p263 = por %p261, %p262
      %p264 = scmp.ne.s32.totalorder %s252, %s253
      %p265 = scmp.eq.s32.totalorder %s34, 2
      %p266 = por %p264, %p265
      %p268 = scmp.ne.s32.totalorder %s253, %s267
      %p269 = scmp.eq.s32.totalorder %s34, 0
      %p270 = por %p268, %p269
      %s271 = ssub.s32 %s28, %s35
      %p272 = scmp.eq.s32.totalorder %s271, 0
      %s274 = sadd.s32 %s273, 1
      %s275 = scalar_select %p272, %s273, %s274
      %p278 = pneg %p272
      %p279 = scmp.eq.s32.totalorder %s28, 2
      %p280 = por %p278, %p279
      %p281 = scmp.ne.s32.totalorder %s273, %s276
      %p282 = scmp.eq.s32.totalorder %s28, 0
      %p283 = por %p281, %p282
      %p284 = scmp.ne.s32.totalorder %s273, %s276
      %p285 = scmp.eq.s32.totalorder %s33, 2
      %p286 = por %p284, %p285
      %p287 = scmp.ne.s32.totalorder %s276, %s277
      %p288 = scmp.eq.s32.totalorder %s33, 0
      %p289 = por %p287, %p288
      %p290 = scmp.ne.s32.totalorder %s276, %s277
      %p291 = scmp.eq.s32.totalorder %s34, 2
      %p292 = por %p290, %p291
      %p294 = scmp.ne.s32.totalorder %s277, %s293
      %p295 = scmp.eq.s32.totalorder %s34, 0
      %p296 = por %p294, %p295
      %s297 = ssub.s32 %s28, %s35
      %p298 = scmp.eq.s32.totalorder %s297, 0
      %s300 = sadd.s32 %s299, 1
      %s301 = scalar_select %p298, %s299, %s300
      %p304 = pneg %p298
      %p305 = scmp.eq.s32.totalorder %s28, 2
      %p306 = por %p304, %p305
      %p307 = scmp.ne.s32.totalorder %s299, %s302
      %p308 = scmp.eq.s32.totalorder %s28, 0
      %p309 = por %p307, %p308
      %p310 = scmp.ne.s32.totalorder %s299, %s302
      %p311 = scmp.eq.s32.totalorder %s33, 2
      %p312 = por %p310, %p311
      %p313 = scmp.ne.s32.totalorder %s302, %s303
      %p314 = scmp.eq.s32.totalorder %s33, 0
      %p315 = por %p313, %p314
      %p316 = scmp.ne.s32.totalorder %s302, %s303
      %p317 = scmp.eq.s32.totalorder %s34, 2
      %p318 = por %p316, %p317
      %p320 = scmp.ne.s32.totalorder %s303, %s319
      %p321 = scmp.eq.s32.totalorder %s34, 0
      %p322 = por %p320, %p321
      %p323 = scmp.le.s32.totalorder 1, %s28
      %p324 = scmp.lt.s32.totalorder %s28, 4
      %p325 = pnand %p323, %p324
      %p326 = pneg %p325
      // Predicated region
      $region9: #{tpu_custom_call.1} parent=5 // pred_check
        _
      $region10: #{tpu_custom_call.1} parent=5 // pred_check_branch
        %328 = sbr.rel (%p325) target = $region12
      $region11: #{tpu_custom_call.1} parent=5 // pred_region
        %s329 = ssub.s32 %s28, 1
        // Predicated region
        $region13: #{tpu_custom_call.1} parent=11 // pred_check
          %p330 = pneg %p179
        $region14: #{tpu_custom_call.1} parent=11 // pred_check_branch
          %332 = sbr.rel (%p330) target = $region16
        $region15: #{tpu_custom_call.1} parent=11 // pred_region
          _
        $region16: #{tpu_custom_call.1} parent=11 // pred_fallthru
          _
        // Predicated region
        $region17: #{tpu_custom_call.1} parent=11 // pred_check
          %p333 = pneg %p200
        $region18: #{tpu_custom_call.1} parent=11 // pred_check_branch
          %335 = sbr.rel (%p333) target = $region20
        $region19: #{tpu_custom_call.1} parent=11 // pred_region
          _
        $region20: #{tpu_custom_call.1} parent=11 // pred_fallthru
          _
        // Predicated region
        $region21: #{tpu_custom_call.1} parent=11 // pred_check
          %p336 = pneg %p221
        $region22: #{tpu_custom_call.1} parent=11 // pred_check_branch
          %338 = sbr.rel (%p336) target = $region24
        $region23: #{tpu_custom_call.1} parent=11 // pred_region
          _
        $region24: #{tpu_custom_call.1} parent=11 // pred_fallthru
          _
        // Predicated region
        $region25: #{tpu_custom_call.1} parent=11 // pred_check
          %p339 = pneg %p242
        $region26: #{tpu_custom_call.1} parent=11 // pred_check_branch
          %341 = sbr.rel (%p339) target = $region28
        $region27: #{tpu_custom_call.1} parent=11 // pred_region
          _
        $region28: #{tpu_custom_call.1} parent=11 // pred_fallthru
          _
        // Predicated region
        $region29: #{tpu_custom_call.1} parent=11 // pred_check
          %p342 = pneg %p263
        $region30: #{tpu_custom_call.1} parent=11 // pred_check_branch
          %344 = sbr.rel (%p342) target = $region32
        $region31: #{tpu_custom_call.1} parent=11 // pred_region
          %s346 = ssub.s32 16, 16
          %347 = vsyncadd [#allocation5], %s346
          %s349 = sshll.u32 %s9, 4
          %s350 = int_to_ptr.vmem [resolvable:$true] %s349
          %352 = dma.vmem_to_smem %s350, 16, [#allocation9], [#allocation5]
        $region32: #{tpu_custom_call.1} parent=11 // pred_fallthru
          _
      $region12: #{tpu_custom_call.1} parent=5 // pred_fallthru
        _
      %p353 = scmp.lt.s32.totalorder %s28, 3
      // Predicated region
      $region33: #{tpu_custom_call.1} parent=5 // pred_check
        %p354 = pneg %p353
      $region34: #{tpu_custom_call.1} parent=5 // pred_check_branch
        %356 = sbr.rel (%p354) target = $region36
      $region35: #{tpu_custom_call.1} parent=5 // pred_region
        // Predicated region
        $region37: #{tpu_custom_call.1} parent=35 // pred_check
          %p357 = pneg %p48
        $region38: #{tpu_custom_call.1} parent=35 // pred_check_branch
          %359 = sbr.rel (%p357) target = $region40
        $region39: #{tpu_custom_call.1} parent=35 // pred_region
          %s360 = sand.u32 %s38, 1
          %s361 = scalar_lea.sflag [#allocation3], %s360
          %s362 = sand.u32 %s38, 1
          %s363 = smul.addr %s362, 8
          %s364 = scalar_lea.vmem [#allocation2], %s363
          %s366 = ssub.s32 128, 128
          %367 = vsyncadd %s361, %s366
          %s368 = smul.addr %s28, 128
          %s369 = scalar_lea.hbm %s0, %s368
          %s371 = sshll.u32 %s364, 4
          %s372 = int_to_ptr.vmem [resolvable:$true] %s371
          %374 = dma.hbm_to_vmem [thread:$0]  %s369, 128, %s372, %s361
        $region40: #{tpu_custom_call.1} parent=35 // pred_fallthru
          _
        // Predicated region
        $region41: #{tpu_custom_call.1} parent=35 // pred_check
          %p375 = pneg %p74
        $region42: #{tpu_custom_call.1} parent=35 // pred_check_branch
          %377 = sbr.rel (%p375) target = $region44
        $region43: #{tpu_custom_call.1} parent=35 // pred_region
          %s378 = sand.u32 %s28, 1
          %s379 = scalar_lea.sflag [#allocation7], %s378
          %s380 = sand.u32 %s64, 1
          %s381 = smul.addr %s380, 128
          %s382 = scalar_lea.vmem [#allocation6], %s381
          %s383 = smul.u32 8, %s28
          %s385 = ssub.s32 2048, 2048
          %386 = vsyncadd %s379, %s385
          %s387 = smul.addr %s383, 2
          %s388 = smul.addr %s387, 128
          %s389 = scalar_lea.hbm %s1, %s388
          %s390 = sshll.u32 %s382, 4
          %s391 = int_to_ptr.vmem [resolvable:$true] %s390
          %396 = dma.hbm_to_vmem [thread:$0]  %s389, 2048, %s391, %s379, 128, 128, 8
        $region44: #{tpu_custom_call.1} parent=35 // pred_fallthru
          _
        // Predicated region
        $region45: #{tpu_custom_call.1} parent=35 // pred_check
          %p397 = pneg %p100
        $region46: #{tpu_custom_call.1} parent=35 // pred_check_branch
          %399 = sbr.rel (%p397) target = $region48
        $region47: #{tpu_custom_call.1} parent=35 // pred_region
          %s400 = sand.u32 %s28, 1
          %s401 = scalar_lea.sflag [#allocation7], %s400
          %s402 = sand.u32 %s90, 1
          %s403 = smul.addr %s402, 128
          %s404 = scalar_lea.vmem [#allocation8], %s403
          %s405 = smul.u32 8, %s28
          %s407 = ssub.s32 2048, 2048
          %408 = vsyncadd %s401, %s407
          %s409 = smul.addr %s405, 2
          %s410 = smul.addr %s409, 128
          %s411 = scalar_lea.hbm %s2, %s410
          %s412 = sshll.u32 %s404, 4
          %s413 = int_to_ptr.vmem [resolvable:$true] %s412
          %418 = dma.hbm_to_vmem [thread:$0]  %s411, 2048, %s413, %s401, 128, 128, 8
        $region48: #{tpu_custom_call.1} parent=35 // pred_fallthru
          _
        // Predicated region
        $region49: #{tpu_custom_call.1} parent=35 // pred_check
          %p419 = pneg %p126
        $region50: #{tpu_custom_call.1} parent=35 // pred_check_branch
          %421 = sbr.rel (%p419) target = $region52
        $region51: #{tpu_custom_call.1} parent=35 // pred_region
          %p422 = scmp.lt.s32.totalorder %s28, 2
          %s423 = scalar_select %p422, %s28, 2
          %s424 = smul.addr %s423, 8
          %s425 = scalar_lea.vmem %s3, %s424
        $region52: #{tpu_custom_call.1} parent=35 // pred_fallthru
          _
        // Predicated region
        $region53: #{tpu_custom_call.1} parent=35 // pred_check
          %p426 = pneg %p152
        $region54: #{tpu_custom_call.1} parent=35 // pred_check_branch
          %428 = sbr.rel (%p426) target = $region56
        $region55: #{tpu_custom_call.1} parent=35 // pred_region
          %p429 = scmp.lt.s32.totalorder %s28, 2
          %s430 = scalar_select %p429, %s28, 2
          %s431 = smul.addr %s430, 8
          %s432 = scalar_lea.vmem %s4, %s431
        $region56: #{tpu_custom_call.1} parent=35 // pred_fallthru
          _
      $region36: #{tpu_custom_call.1} parent=5 // pred_fallthru
        _
      %p433 = scmp.le.s32.totalorder 1, %s28
      %p434 = scmp.lt.s32.totalorder %s28, 4
      %p435 = pnand %p433, %p434
      %p436 = pneg %p435
      // Predicated region
      $region57: #{tpu_custom_call.1} parent=5 // pred_check
        _
      $region58: #{tpu_custom_call.1} parent=5 // pred_check_branch
        %438 = sbr.rel (%p435) target = $region60
      $region59: #{tpu_custom_call.1} parent=5 // pred_region
        %s439 = ssub.s32 %s28, 1
        %s440 = sand.u32 %s41, 1
        %s441 = scalar_lea.sflag [#allocation3], %s440
        %s442 = sand.u32 %s41, 1
        %s443 = smul.addr %s442, 8
        %s444 = scalar_lea.vmem [#allocation2], %s443
        // Predicated region
        $region61: #{tpu_custom_call.1} parent=59 // pred_check
          %p445 = pneg %p54
        $region62: #{tpu_custom_call.1} parent=59 // pred_check_branch
          %447 = sbr.rel (%p445) target = $region64
        $region63: #{tpu_custom_call.1} parent=59 // pred_region
          %448 = dma.done %s441, 128
        $region64: #{tpu_custom_call.1} parent=59 // pred_fallthru
          _
        %s449 = sand.u32 %s33, 1
        %s450 = scalar_lea.sflag [#allocation7], %s449
        %s451 = sand.u32 %s67, 1
        %s452 = smul.addr %s451, 128
        %s453 = scalar_lea.vmem [#allocation6], %s452
        // Predicated region
        $region65: #{tpu_custom_call.1} parent=59 // pred_check
          %p454 = pneg %p80
        $region66: #{tpu_custom_call.1} parent=59 // pred_check_branch
          %456 = sbr.rel (%p454) target = $region68
        $region67: #{tpu_custom_call.1} parent=59 // pred_region
          %457 = dma.done %s450, 2048
        $region68: #{tpu_custom_call.1} parent=59 // pred_fallthru
          _
        %s458 = sand.u32 %s33, 1
        %s459 = scalar_lea.sflag [#allocation7], %s458
        %s460 = sand.u32 %s93, 1
        %s461 = smul.addr %s460, 128
        %s462 = scalar_lea.vmem [#allocation8], %s461
        // Predicated region
        $region69: #{tpu_custom_call.1} parent=59 // pred_check
          %p463 = pneg %p106
        $region70: #{tpu_custom_call.1} parent=59 // pred_check_branch
          %465 = sbr.rel (%p463) target = $region72
        $region71: #{tpu_custom_call.1} parent=59 // pred_region
          %466 = dma.done %s459, 2048
        $region72: #{tpu_custom_call.1} parent=59 // pred_fallthru
          _
        // Predicated region
        $region73: #{tpu_custom_call.1} parent=59 // pred_check
          %p467 = pneg %p263
        $region74: #{tpu_custom_call.1} parent=59 // pred_check_branch
          %469 = sbr.rel (%p467) target = $region76
        $region75: #{tpu_custom_call.1} parent=59 // pred_region
          %470 = dma.done [#allocation5], 16
        $region76: #{tpu_custom_call.1} parent=59 // pred_fallthru
          _
        %471 = sfence
        %s472 = sand.u32 %s41, 1
        %s473 = scalar_lea.sflag [#allocation3], %s472
        %s474 = sand.u32 %s41, 1
        %s475 = smul.addr %s474, 8
        %s476 = scalar_lea.vmem [#allocation2], %s475
        %p477 = pneg %p54
        %p478 = pneg %p51
        %s479 = sand.u32 %s33, 1
        %s480 = scalar_lea.sflag [#allocation7], %s479
        %s481 = sand.u32 %s67, 1
        %s482 = smul.addr %s481, 128
        %s483 = scalar_lea.vmem [#allocation6], %s482
        %p484 = pneg %p80
        %p485 = pneg %p77
        %s486 = sand.u32 %s33, 1
        %s487 = scalar_lea.sflag [#allocation7], %s486
        %s488 = sand.u32 %s93, 1
        %s489 = smul.addr %s488, 128
        %s490 = scalar_lea.vmem [#allocation8], %s489
        %p491 = pneg %p106
        %p492 = pneg %p103
        %p493 = scmp.lt.s32.totalorder %s33, 2
        %s494 = scalar_select %p493, %s33, 2
        %s495 = smul.addr %s494, 8
        %s496 = scalar_lea.vmem %s3, %s495
        %p497 = pneg %p132
        %p498 = pneg %p129
        %p499 = scmp.lt.s32.totalorder %s33, 2
        %s500 = scalar_select %p499, %s33, 2
        %s501 = smul.addr %s500, 8
        %s502 = scalar_lea.vmem %s4, %s501
        %p503 = pneg %p158
        %p504 = pneg %p155
        %p505 = pneg %p179
        %p506 = pneg %p176
        %p507 = pneg %p200
        %p508 = pneg %p197
        %p509 = pneg %p221
        %p510 = pneg %p218
        %p511 = pneg %p242
        %p512 = pneg %p239
        %p513 = pneg %p263
        %p514 = pneg %p260
        %p515 = pneg %p289
        %p516 = pneg %p286
        %p517 = scmp.lt.s32.totalorder %s33, 2
        %s518 = scalar_select %p517, %s33, 2
        %s519 = smul.addr %s518, 8
        %s520 = scalar_lea.vmem %s10, %s519
        %p521 = pneg %p315
        %p522 = pneg %p312
        %s523 = sand.u32 %s302, 1
        %s524 = scalar_lea.sflag [#allocation4], %s523
        %s525 = sand.u32 %s302, 1
        %s526 = smul.addr %s525, 8
        %s527 = scalar_lea.vmem [#allocation10], %s526
        %s528 = smul.u32 8, %s33
        %s529 = smul.u32 8, %s33
        %p530 = scmp.lt.s32.totalorder %s33, 2
        %s531 = scalar_select %p530, %s33, 2
        %s532 = smul.addr %s531, 8
        %s533 = scalar_lea.vmem %s3, %s532
        %p534 = scmp.lt.s32.totalorder %s33, 2
        %s535 = scalar_select %p534, %s33, 2
        %s536 = smul.addr %s535, 8
        %s537 = scalar_lea.vmem %s4, %s536
        %p538 = scmp.lt.s32.totalorder %s33, 2
        %s539 = scalar_select %p538, %s33, 2
        %s540 = smul.addr %s539, 8
        %s541 = scalar_lea.vmem %s10, %s540
        %v542 = vld [vmem:[%s444] sm:$0xff]
        %v543 = vld [vmem:[%s5] sm:$0xff]
        %v544 = vld [vmem:[%s5 + $0x8] sm:$0xff]
        %v545 = vld [vmem:[%s5 + $0x10] sm:$0xff]
        %v546 = vld [vmem:[%s5 + $0x18] sm:$0xff]
        %v547 = vld [vmem:[%s6] sm:$0x1]
        %v548 = vld [vmem:[%s7] sm:$0xff]
        %v549 = vld [vmem:[%s7 + $0x8] sm:$0xff]
        %v550 = vld [vmem:[%s7 + $0x10] sm:$0xff]
        %v551 = vld [vmem:[%s7 + $0x18] sm:$0xff]
        %v552 = vld [vmem:[%s8] sm:$0x1]
        %v554 = vlaneseq
        %v555 = vshrl.u32 %v554, 7
        %v556 = vsub.s32 0, %v555
        %v557 = vrot.slane %v547, %v556
        %vm559 = vcmask 261120
        %v561 = vsel %vm559, %v542, 0
        %v564 = vsel %vm559, %v543, 0
        %v567 = vsel %vm559, %v544, 0
        %v570 = vsel %vm559, %v545, 0
        %v573 = vsel %vm559, %v546, 0
        %575 = vmatprep.subr.mxu0 0.0
        %576 = vmatpush1.xpose.msra.mxu0 0.0
        %577 = vmatprep.subr.mxu0 0.0
        %578 = vmatpush1.xpose.msra.mxu0 0.0
        %579 = vmatprep.subr.mxu0 0.0
        %580 = vmatpush1.xpose.msra.mxu0 0.0
        %581 = vmatprep.subr.mxu0 0.0
        %582 = vmatpush1.xpose.msra.mxu0 0.0
        %583 = vmatprep.subr.mxu0 0.0
        %584 = vmatpush1.xpose.msra.mxu0 0.0
        %585 = vmatprep.subr.mxu0 0.0
        %586 = vmatpush1.xpose.msra.mxu0 0.0
        %587 = vmatprep.subr.mxu0 0.0
        %588 = vmatpush1.xpose.msra.mxu0 0.0
        %589 = vmatprep.subr.mxu0 0.0
        %590 = vmatpush1.xpose.msra.mxu0 0.0
        %591 = vmatprep.subr.mxu0 0.0
        %592 = vmatpush1.xpose.msra.mxu0 0.0
        %593 = vmatprep.subr.mxu0 0.0
        %594 = vmatpush1.xpose.msra.mxu0 0.0
        %595 = vmatprep.subr.mxu0 0.0
        %596 = vmatpush1.xpose.msra.mxu0 0.0
        %597 = vmatprep.subr.mxu0 0.0
        %598 = vmatpush1.xpose.msra.mxu0 0.0
        %599 = vmatprep.subr.mxu0 0.0
        %v600 = vand.u32 %v573, 4294901760
        %601 = vmatpush1.xpose.msra.mxu0 %v600
        %602 = vmatprep.subr.mxu0 0.0
        %v603 = vand.u32 %v570, 4294901760
        %604 = vmatpush1.xpose.msra.mxu0 %v603
        %605 = vmatprep.subr.mxu0 0.0
        %v606 = vand.u32 %v567, 4294901760
        %607 = vmatpush1.xpose.msra.mxu0 %v606
        %608 = vmatprep.subr.mxu0 0.0
        %v609 = vand.u32 %v564, 4294901760
        %610 = vmatpush1.xpose.msra.mxu0 %v609
        %611 = vmatprep.subr.mxu0 0.0
        %612 = vmatpush2.xpose.msra.mxu0 0.0
        %613 = vmatprep.subr.mxu0 0.0
        %614 = vmatpush2.xpose.msra.mxu0 0.0
        %615 = vmatprep.subr.mxu0 0.0
        %616 = vmatpush2.xpose.msra.mxu0 0.0
        %617 = vmatprep.subr.mxu0 0.0
        %618 = vmatpush2.xpose.msra.mxu0 0.0
        %619 = vmatprep.subr.mxu0 0.0
        %620 = vmatpush2.xpose.msra.mxu0 0.0
        %621 = vmatprep.subr.mxu0 0.0
        %622 = vmatpush2.xpose.msra.mxu0 0.0
        %623 = vmatprep.subr.mxu0 0.0
        %624 = vmatpush2.xpose.msra.mxu0 0.0
        %625 = vmatprep.subr.mxu0 0.0
        %626 = vmatpush2.xpose.msra.mxu0 0.0
        %627 = vmatprep.subr.mxu0 0.0
        %628 = vmatpush2.xpose.msra.mxu0 0.0
        %629 = vmatprep.subr.mxu0 0.0
        %630 = vmatpush2.xpose.msra.mxu0 0.0
        %631 = vmatprep.subr.mxu0 0.0
        %632 = vmatpush2.xpose.msra.mxu0 0.0
        %633 = vmatprep.subr.mxu0 0.0
        %634 = vmatpush2.xpose.msra.mxu0 0.0
        %635 = vmatprep.subr.mxu0 0.0
        %636 = vmatpush2.xpose.msra.mxu0 0.0
        %637 = vmatprep.subr.mxu0 0.0
        %638 = vmatpush2.xpose.msra.mxu0 0.0
        %639 = vmatprep.subr.mxu0 0.0
        %640 = vmatpush2.xpose.msra.mxu0 0.0
        %641 = vmatprep.subr.mxu0 0.0
        %642 = vmatpush2.xpose.msra.mxu0 0.0
        %643 = vmatprep.mubr.f32.mxu0 0.0
        %v644 = vand.u32 %v561, 4294901760
        %v645 = vsub.f32 %v561, %v644
        %v646 = vand.u32 %v645, 4294901760
        %v647 = vsub.f32 %v645, %v646
        %v648 = vand.u32 %v647, 4294901760
        %649 = vmatmul.mubr.f32.gmra.mxu0 %v648
        %v650 = vpop.f32.mrf.mxu0
        %v651 = vadd.f32 %v557, %v650
        %v652 = vpop.f32.mrf.mxu0
        %653 = vdwg.mxu0
        %654 = vmatprep.subr.mxu0 0.0
        %655 = vmatpush1.xpose.msra.mxu0 0.0
        %656 = vmatprep.subr.mxu0 0.0
        %657 = vmatpush1.xpose.msra.mxu0 0.0
        %658 = vmatprep.subr.mxu0 0.0
        %659 = vmatpush1.xpose.msra.mxu0 0.0
        %660 = vmatprep.subr.mxu0 0.0
        %661 = vmatpush1.xpose.msra.mxu0 0.0
        %662 = vmatprep.subr.mxu0 0.0
        %663 = vmatpush1.xpose.msra.mxu0 0.0
        %664 = vmatprep.subr.mxu0 0.0
        %665 = vmatpush1.xpose.msra.mxu0 0.0
        %666 = vmatprep.subr.mxu0 0.0
        %667 = vmatpush1.xpose.msra.mxu0 0.0
        %668 = vmatprep.subr.mxu0 0.0
        %669 = vmatpush1.xpose.msra.mxu0 0.0
        %670 = vmatprep.subr.mxu0 0.0
        %671 = vmatpush1.xpose.msra.mxu0 0.0
        %672 = vmatprep.subr.mxu0 0.0
        %673 = vmatpush1.xpose.msra.mxu0 0.0
        %674 = vmatprep.subr.mxu0 0.0
        %675 = vmatpush1.xpose.msra.mxu0 0.0
        %676 = vmatprep.subr.mxu0 0.0
        %677 = vmatpush1.xpose.msra.mxu0 0.0
        %678 = vmatprep.subr.mxu0 0.0
        %v679 = vand.u32 %v573, 4294901760
        %v680 = vsub.f32 %v573, %v679
        %v681 = vand.u32 %v680, 4294901760
        %v682 = vsub.f32 %v680, %v681
        %v683 = vand.u32 %v682, 4294901760
        %684 = vmatpush1.xpose.msra.mxu0 %v683
        %685 = vmatprep.subr.mxu0 0.0
        %v686 = vand.u32 %v570, 4294901760
        %v687 = vsub.f32 %v570, %v686
        %v688 = vand.u32 %v687, 4294901760
        %v689 = vsub.f32 %v687, %v688
        %v690 = vand.u32 %v689, 4294901760
        %691 = vmatpush1.xpose.msra.mxu0 %v690
        %692 = vmatprep.subr.mxu0 0.0
        %v693 = vand.u32 %v567, 4294901760
        %v694 = vsub.f32 %v567, %v693
        %v695 = vand.u32 %v694, 4294901760
        %v696 = vsub.f32 %v694, %v695
        %v697 = vand.u32 %v696, 4294901760
        %698 = vmatpush1.xpose.msra.mxu0 %v697
        %699 = vmatprep.subr.mxu0 0.0
        %v700 = vand.u32 %v564, 4294901760
        %v701 = vsub.f32 %v564, %v700
        %v702 = vand.u32 %v701, 4294901760
        %v703 = vsub.f32 %v701, %v702
        %v704 = vand.u32 %v703, 4294901760
        %705 = vmatpush1.xpose.msra.mxu0 %v704
        %706 = vmatprep.subr.mxu0 0.0
        %707 = vmatpush2.xpose.msra.mxu0 0.0
        %708 = vmatprep.subr.mxu0 0.0
        %709 = vmatpush2.xpose.msra.mxu0 0.0
        %710 = vmatprep.subr.mxu0 0.0
        %711 = vmatpush2.xpose.msra.mxu0 0.0
        %712 = vmatprep.subr.mxu0 0.0
        %713 = vmatpush2.xpose.msra.mxu0 0.0
        %714 = vmatprep.subr.mxu0 0.0
        %715 = vmatpush2.xpose.msra.mxu0 0.0
        %716 = vmatprep.subr.mxu0 0.0
        %717 = vmatpush2.xpose.msra.mxu0 0.0
        %718 = vmatprep.subr.mxu0 0.0
        %719 = vmatpush2.xpose.msra.mxu0 0.0
        %720 = vmatprep.subr.mxu0 0.0
        %721 = vmatpush2.xpose.msra.mxu0 0.0
        %722 = vmatprep.subr.mxu0 0.0
        %723 = vmatpush2.xpose.msra.mxu0 0.0
        %724 = vmatprep.subr.mxu0 0.0
        %725 = vmatpush2.xpose.msra.mxu0 0.0
        %726 = vmatprep.subr.mxu0 0.0
        %727 = vmatpush2.xpose.msra.mxu0 0.0
        %728 = vmatprep.subr.mxu0 0.0
        %729 = vmatpush2.xpose.msra.mxu0 0.0
        %730 = vmatprep.subr.mxu0 0.0
        %731 = vmatpush2.xpose.msra.mxu0 0.0
        %732 = vmatprep.subr.mxu0 0.0
        %733 = vmatpush2.xpose.msra.mxu0 0.0
        %734 = vmatprep.subr.mxu0 0.0
        %735 = vmatpush2.xpose.msra.mxu0 0.0
        %736 = vmatprep.subr.mxu0 0.0
        %737 = vmatpush2.xpose.msra.mxu0 0.0
        %738 = vmatprep.mubr.f32.mxu0 0.0
        %v739 = vand.u32 %v561, 4294901760
        %740 = vmatmul.mubr.f32.gmra.mxu0 %v739
        %v741 = vpop.f32.mrf.mxu0
        %v742 = vadd.f32 %v651, %v741
        %v743 = vpop.f32.mrf.mxu0
        %744 = vdwg.mxu0
        %745 = vmatprep.subr.mxu0 0.0
        %746 = vmatpush1.xpose.msra.mxu0 0.0
        %747 = vmatprep.subr.mxu0 0.0
        %748 = vmatpush1.xpose.msra.mxu0 0.0
        %749 = vmatprep.subr.mxu0 0.0
        %750 = vmatpush1.xpose.msra.mxu0 0.0
        %751 = vmatprep.subr.mxu0 0.0
        %752 = vmatpush1.xpose.msra.mxu0 0.0
        %753 = vmatprep.subr.mxu0 0.0
        %754 = vmatpush1.xpose.msra.mxu0 0.0
        %755 = vmatprep.subr.mxu0 0.0
        %756 = vmatpush1.xpose.msra.mxu0 0.0
        %757 = vmatprep.subr.mxu0 0.0
        %758 = vmatpush1.xpose.msra.mxu0 0.0
        %759 = vmatprep.subr.mxu0 0.0
        %760 = vmatpush1.xpose.msra.mxu0 0.0
        %761 = vmatprep.subr.mxu0 0.0
        %762 = vmatpush1.xpose.msra.mxu0 0.0
        %763 = vmatprep.subr.mxu0 0.0
        %764 = vmatpush1.xpose.msra.mxu0 0.0
        %765 = vmatprep.subr.mxu0 0.0
        %766 = vmatpush1.xpose.msra.mxu0 0.0
        %767 = vmatprep.subr.mxu0 0.0
        %768 = vmatpush1.xpose.msra.mxu0 0.0
        %769 = vmatprep.subr.mxu0 0.0
        %v770 = vand.u32 %v573, 4294901760
        %v771 = vsub.f32 %v573, %v770
        %772 = vmatpush1.xpose.msra.mxu0 %v771
        %773 = vmatprep.subr.mxu0 0.0
        %v774 = vand.u32 %v570, 4294901760
        %v775 = vsub.f32 %v570, %v774
        %776 = vmatpush1.xpose.msra.mxu0 %v775
        %777 = vmatprep.subr.mxu0 0.0
        %v778 = vand.u32 %v567, 4294901760
        %v779 = vsub.f32 %v567, %v778
        %780 = vmatpush1.xpose.msra.mxu0 %v779
        %781 = vmatprep.subr.mxu0 0.0
        %v782 = vand.u32 %v564, 4294901760
        %v783 = vsub.f32 %v564, %v782
        %784 = vmatpush1.xpose.msra.mxu0 %v783
        %785 = vmatprep.subr.mxu0 0.0
        %786 = vmatpush2.xpose.msra.mxu0 0.0
        %787 = vmatprep.subr.mxu0 0.0
        %788 = vmatpush2.xpose.msra.mxu0 0.0
        %789 = vmatprep.subr.mxu0 0.0
        %790 = vmatpush2.xpose.msra.mxu0 0.0
        %791 = vmatprep.subr.mxu0 0.0
        %792 = vmatpush2.xpose.msra.mxu0 0.0
        %793 = vmatprep.subr.mxu0 0.0
        %794 = vmatpush2.xpose.msra.mxu0 0.0
        %795 = vmatprep.subr.mxu0 0.0
        %796 = vmatpush2.xpose.msra.mxu0 0.0
        %797 = vmatprep.subr.mxu0 0.0
        %798 = vmatpush2.xpose.msra.mxu0 0.0
        %799 = vmatprep.subr.mxu0 0.0
        %800 = vmatpush2.xpose.msra.mxu0 0.0
        %801 = vmatprep.subr.mxu0 0.0
        %802 = vmatpush2.xpose.msra.mxu0 0.0
        %803 = vmatprep.subr.mxu0 0.0
        %804 = vmatpush2.xpose.msra.mxu0 0.0
        %805 = vmatprep.subr.mxu0 0.0
        %806 = vmatpush2.xpose.msra.mxu0 0.0
        %807 = vmatprep.subr.mxu0 0.0
        %808 = vmatpush2.xpose.msra.mxu0 0.0
        %809 = vmatprep.subr.mxu0 0.0
        %810 = vmatpush2.xpose.msra.mxu0 0.0
        %811 = vmatprep.subr.mxu0 0.0
        %812 = vmatpush2.xpose.msra.mxu0 0.0
        %813 = vmatprep.subr.mxu0 0.0
        %814 = vmatpush2.xpose.msra.mxu0 0.0
        %815 = vmatprep.subr.mxu0 0.0
        %816 = vmatpush2.xpose.msra.mxu0 0.0
        %817 = vmatprep.mubr.f32.mxu0 0.0
        %v818 = vand.u32 %v561, 4294901760
        %v819 = vsub.f32 %v561, %v818
        %820 = vmatmul.mubr.f32.gmra.mxu0 %v819
        %v821 = vpop.f32.mrf.mxu0
        %v822 = vadd.f32 %v742, %v821
        %v823 = vpop.f32.mrf.mxu0
        %824 = vdwg.mxu0
        %825 = vmatprep.subr.mxu0 0.0
        %826 = vmatpush1.xpose.msra.mxu0 0.0
        %827 = vmatprep.subr.mxu0 0.0
        %828 = vmatpush1.xpose.msra.mxu0 0.0
        %829 = vmatprep.subr.mxu0 0.0
        %830 = vmatpush1.xpose.msra.mxu0 0.0
        %831 = vmatprep.subr.mxu0 0.0
        %832 = vmatpush1.xpose.msra.mxu0 0.0
        %833 = vmatprep.subr.mxu0 0.0
        %834 = vmatpush1.xpose.msra.mxu0 0.0
        %835 = vmatprep.subr.mxu0 0.0
        %836 = vmatpush1.xpose.msra.mxu0 0.0
        %837 = vmatprep.subr.mxu0 0.0
        %838 = vmatpush1.xpose.msra.mxu0 0.0
        %839 = vmatprep.subr.mxu0 0.0
        %840 = vmatpush1.xpose.msra.mxu0 0.0
        %841 = vmatprep.subr.mxu0 0.0
        %842 = vmatpush1.xpose.msra.mxu0 0.0
        %843 = vmatprep.subr.mxu0 0.0
        %844 = vmatpush1.xpose.msra.mxu0 0.0
        %845 = vmatprep.subr.mxu0 0.0
        %846 = vmatpush1.xpose.msra.mxu0 0.0
        %847 = vmatprep.subr.mxu0 0.0
        %848 = vmatpush1.xpose.msra.mxu0 0.0
        %849 = vmatprep.subr.mxu0 0.0
        %v850 = vand.u32 %v573, 4294901760
        %851 = vmatpush1.xpose.msra.mxu0 %v850
        %852 = vmatprep.subr.mxu0 0.0
        %v853 = vand.u32 %v570, 4294901760
        %854 = vmatpush1.xpose.msra.mxu0 %v853
        %855 = vmatprep.subr.mxu0 0.0
        %v856 = vand.u32 %v567, 4294901760
        %857 = vmatpush1.xpose.msra.mxu0 %v856
        %858 = vmatprep.subr.mxu0 0.0
        %v859 = vand.u32 %v564, 4294901760
        %860 = vmatpush1.xpose.msra.mxu0 %v859
        %861 = vmatprep.subr.mxu0 0.0
        %862 = vmatpush2.xpose.msra.mxu0 0.0
        %863 = vmatprep.subr.mxu0 0.0
        %864 = vmatpush2.xpose.msra.mxu0 0.0
        %865 = vmatprep.subr.mxu0 0.0
        %866 = vmatpush2.xpose.msra.mxu0 0.0
        %867 = vmatprep.subr.mxu0 0.0
        %868 = vmatpush2.xpose.msra.mxu0 0.0
        %869 = vmatprep.subr.mxu0 0.0
        %870 = vmatpush2.xpose.msra.mxu0 0.0
        %871 = vmatprep.subr.mxu0 0.0
        %872 = vmatpush2.xpose.msra.mxu0 0.0
        %873 = vmatprep.subr.mxu0 0.0
        %874 = vmatpush2.xpose.msra.mxu0 0.0
        %875 = vmatprep.subr.mxu0 0.0
        %876 = vmatpush2.xpose.msra.mxu0 0.0
        %877 = vmatprep.subr.mxu0 0.0
        %878 = vmatpush2.xpose.msra.mxu0 0.0
        %879 = vmatprep.subr.mxu0 0.0
        %880 = vmatpush2.xpose.msra.mxu0 0.0
        %881 = vmatprep.subr.mxu0 0.0
        %882 = vmatpush2.xpose.msra.mxu0 0.0
        %883 = vmatprep.subr.mxu0 0.0
        %884 = vmatpush2.xpose.msra.mxu0 0.0
        %885 = vmatprep.subr.mxu0 0.0
        %886 = vmatpush2.xpose.msra.mxu0 0.0
        %887 = vmatprep.subr.mxu0 0.0
        %888 = vmatpush2.xpose.msra.mxu0 0.0
        %889 = vmatprep.subr.mxu0 0.0
        %890 = vmatpush2.xpose.msra.mxu0 0.0
        %891 = vmatprep.subr.mxu0 0.0
        %892 = vmatpush2.xpose.msra.mxu0 0.0
        %893 = vmatprep.mubr.f32.mxu0 0.0
        %v894 = vand.u32 %v561, 4294901760
        %v895 = vsub.f32 %v561, %v894
        %v896 = vand.u32 %v895, 4294901760
        %897 = vmatmul.mubr.f32.gmra.mxu0 %v896
        %v898 = vpop.f32.mrf.mxu0
        %v899 = vadd.f32 %v822, %v898
        %v900 = vpop.f32.mrf.mxu0
        %901 = vdwg.mxu0
        %902 = vmatprep.subr.mxu0 0.0
        %903 = vmatpush1.xpose.msra.mxu0 0.0
        %904 = vmatprep.subr.mxu0 0.0
        %905 = vmatpush1.xpose.msra.mxu0 0.0
        %906 = vmatprep.subr.mxu0 0.0
        %907 = vmatpush1.xpose.msra.mxu0 0.0
        %908 = vmatprep.subr.mxu0 0.0
        %909 = vmatpush1.xpose.msra.mxu0 0.0
        %910 = vmatprep.subr.mxu0 0.0
        %911 = vmatpush1.xpose.msra.mxu0 0.0
        %912 = vmatprep.subr.mxu0 0.0
        %913 = vmatpush1.xpose.msra.mxu0 0.0
        %914 = vmatprep.subr.mxu0 0.0
        %915 = vmatpush1.xpose.msra.mxu0 0.0
        %916 = vmatprep.subr.mxu0 0.0
        %917 = vmatpush1.xpose.msra.mxu0 0.0
        %918 = vmatprep.subr.mxu0 0.0
        %919 = vmatpush1.xpose.msra.mxu0 0.0
        %920 = vmatprep.subr.mxu0 0.0
        %921 = vmatpush1.xpose.msra.mxu0 0.0
        %922 = vmatprep.subr.mxu0 0.0
        %923 = vmatpush1.xpose.msra.mxu0 0.0
        %924 = vmatprep.subr.mxu0 0.0
        %925 = vmatpush1.xpose.msra.mxu0 0.0
        %926 = vmatprep.subr.mxu0 0.0
        %v927 = vand.u32 %v573, 4294901760
        %v928 = vsub.f32 %v573, %v927
        %v929 = vand.u32 %v928, 4294901760
        %930 = vmatpush1.xpose.msra.mxu0 %v929
        %931 = vmatprep.subr.mxu0 0.0
        %v932 = vand.u32 %v570, 4294901760
        %v933 = vsub.f32 %v570, %v932
        %v934 = vand.u32 %v933, 4294901760
        %935 = vmatpush1.xpose.msra.mxu0 %v934
        %936 = vmatprep.subr.mxu0 0.0
        %v937 = vand.u32 %v567, 4294901760
        %v938 = vsub.f32 %v567, %v937
        %v939 = vand.u32 %v938, 4294901760
        %940 = vmatpush1.xpose.msra.mxu0 %v939
        %941 = vmatprep.subr.mxu0 0.0
        %v942 = vand.u32 %v564, 4294901760
        %v943 = vsub.f32 %v564, %v942
        %v944 = vand.u32 %v943, 4294901760
        %945 = vmatpush1.xpose.msra.mxu0 %v944
        %946 = vmatprep.subr.mxu0 0.0
        %947 = vmatpush2.xpose.msra.mxu0 0.0
        %948 = vmatprep.subr.mxu0 0.0
        %949 = vmatpush2.xpose.msra.mxu0 0.0
        %950 = vmatprep.subr.mxu0 0.0
        %951 = vmatpush2.xpose.msra.mxu0 0.0
        %952 = vmatprep.subr.mxu0 0.0
        %953 = vmatpush2.xpose.msra.mxu0 0.0
        %954 = vmatprep.subr.mxu0 0.0
        %955 = vmatpush2.xpose.msra.mxu0 0.0
        %956 = vmatprep.subr.mxu0 0.0
        %957 = vmatpush2.xpose.msra.mxu0 0.0
        %958 = vmatprep.subr.mxu0 0.0
        %959 = vmatpush2.xpose.msra.mxu0 0.0
        %960 = vmatprep.subr.mxu0 0.0
        %961 = vmatpush2.xpose.msra.mxu0 0.0
        %962 = vmatprep.subr.mxu0 0.0
        %963 = vmatpush2.xpose.msra.mxu0 0.0
        %964 = vmatprep.subr.mxu0 0.0
        %965 = vmatpush2.xpose.msra.mxu0 0.0
        %966 = vmatprep.subr.mxu0 0.0
        %967 = vmatpush2.xpose.msra.mxu0 0.0
        %968 = vmatprep.subr.mxu0 0.0
        %969 = vmatpush2.xpose.msra.mxu0 0.0
        %970 = vmatprep.subr.mxu0 0.0
        %971 = vmatpush2.xpose.msra.mxu0 0.0
        %972 = vmatprep.subr.mxu0 0.0
        %973 = vmatpush2.xpose.msra.mxu0 0.0
        %974 = vmatprep.subr.mxu0 0.0
        %975 = vmatpush2.xpose.msra.mxu0 0.0
        %976 = vmatprep.subr.mxu0 0.0
        %977 = vmatpush2.xpose.msra.mxu0 0.0
        %978 = vmatprep.mubr.f32.mxu0 0.0
        %v979 = vand.u32 %v561, 4294901760
        %980 = vmatmul.mubr.f32.gmra.mxu0 %v979
        %v981 = vpop.f32.mrf.mxu0
        %v982 = vadd.f32 %v899, %v981
        %v983 = vpop.f32.mrf.mxu0
        %984 = vdwg.mxu0
        %985 = vmatprep.subr.mxu0 0.0
        %986 = vmatpush1.xpose.msra.mxu0 0.0
        %987 = vmatprep.subr.mxu0 0.0
        %988 = vmatpush1.xpose.msra.mxu0 0.0
        %989 = vmatprep.subr.mxu0 0.0
        %990 = vmatpush1.xpose.msra.mxu0 0.0
        %991 = vmatprep.subr.mxu0 0.0
        %992 = vmatpush1.xpose.msra.mxu0 0.0
        %993 = vmatprep.subr.mxu0 0.0
        %994 = vmatpush1.xpose.msra.mxu0 0.0
        %995 = vmatprep.subr.mxu0 0.0
        %996 = vmatpush1.xpose.msra.mxu0 0.0
        %997 = vmatprep.subr.mxu0 0.0
        %998 = vmatpush1.xpose.msra.mxu0 0.0
        %999 = vmatprep.subr.mxu0 0.0
        %1000 = vmatpush1.xpose.msra.mxu0 0.0
        %1001 = vmatprep.subr.mxu0 0.0
        %1002 = vmatpush1.xpose.msra.mxu0 0.0
        %1003 = vmatprep.subr.mxu0 0.0
        %1004 = vmatpush1.xpose.msra.mxu0 0.0
        %1005 = vmatprep.subr.mxu0 0.0
        %1006 = vmatpush1.xpose.msra.mxu0 0.0
        %1007 = vmatprep.subr.mxu0 0.0
        %1008 = vmatpush1.xpose.msra.mxu0 0.0
        %1009 = vmatprep.subr.mxu0 0.0
        %v1010 = vand.u32 %v573, 4294901760
        %1011 = vmatpush1.xpose.msra.mxu0 %v1010
        %1012 = vmatprep.subr.mxu0 0.0
        %v1013 = vand.u32 %v570, 4294901760
        %1014 = vmatpush1.xpose.msra.mxu0 %v1013
        %1015 = vmatprep.subr.mxu0 0.0
        %v1016 = vand.u32 %v567, 4294901760
        %1017 = vmatpush1.xpose.msra.mxu0 %v1016
        %1018 = vmatprep.subr.mxu0 0.0
        %v1019 = vand.u32 %v564, 4294901760
        %1020 = vmatpush1.xpose.msra.mxu0 %v1019
        %1021 = vmatprep.subr.mxu0 0.0
        %1022 = vmatpush2.xpose.msra.mxu0 0.0
        %1023 = vmatprep.subr.mxu0 0.0
        %1024 = vmatpush2.xpose.msra.mxu0 0.0
        %1025 = vmatprep.subr.mxu0 0.0
        %1026 = vmatpush2.xpose.msra.mxu0 0.0
        %1027 = vmatprep.subr.mxu0 0.0
        %1028 = vmatpush2.xpose.msra.mxu0 0.0
        %1029 = vmatprep.subr.mxu0 0.0
        %1030 = vmatpush2.xpose.msra.mxu0 0.0
        %1031 = vmatprep.subr.mxu0 0.0
        %1032 = vmatpush2.xpose.msra.mxu0 0.0
        %1033 = vmatprep.subr.mxu0 0.0
        %1034 = vmatpush2.xpose.msra.mxu0 0.0
        %1035 = vmatprep.subr.mxu0 0.0
        %1036 = vmatpush2.xpose.msra.mxu0 0.0
        %1037 = vmatprep.subr.mxu0 0.0
        %1038 = vmatpush2.xpose.msra.mxu0 0.0
        %1039 = vmatprep.subr.mxu0 0.0
        %1040 = vmatpush2.xpose.msra.mxu0 0.0
        %1041 = vmatprep.subr.mxu0 0.0
        %1042 = vmatpush2.xpose.msra.mxu0 0.0
        %1043 = vmatprep.subr.mxu0 0.0
        %1044 = vmatpush2.xpose.msra.mxu0 0.0
        %1045 = vmatprep.subr.mxu0 0.0
        %1046 = vmatpush2.xpose.msra.mxu0 0.0
        %1047 = vmatprep.subr.mxu0 0.0
        %1048 = vmatpush2.xpose.msra.mxu0 0.0
        %1049 = vmatprep.subr.mxu0 0.0
        %1050 = vmatpush2.xpose.msra.mxu0 0.0
        %1051 = vmatprep.subr.mxu0 0.0
        %1052 = vmatpush2.xpose.msra.mxu0 0.0
        %1053 = vmatprep.mubr.f32.mxu0 0.0
        %v1054 = vand.u32 %v561, 4294901760
        %1055 = vmatmul.mubr.f32.gmra.mxu0 %v1054
        %v1056 = vpop.f32.mrf.mxu0
        %v1057 = vadd.f32 %v982, %v1056
        %v1058 = vpop.f32.mrf.mxu0
        %1059 = vdwg.mxu0
        %v1061 = vsel %vm559, %v1057, 0
        %1063 = vmatprep.subr.mxu0 0.0
        %1064 = vmatpush1.msra.mxu0 0.0
        %1065 = vmatprep.subr.mxu0 0.0
        %1066 = vmatpush1.msra.mxu0 0.0
        %1067 = vmatprep.subr.mxu0 0.0
        %1068 = vmatpush1.msra.mxu0 0.0
        %1069 = vmatprep.subr.mxu0 0.0
        %1070 = vmatpush1.msra.mxu0 0.0
        %1071 = vmatprep.subr.mxu0 0.0
        %1072 = vmatpush1.msra.mxu0 0.0
        %1073 = vmatprep.subr.mxu0 0.0
        %1074 = vmatpush1.msra.mxu0 0.0
        %1075 = vmatprep.subr.mxu0 0.0
        %1076 = vmatpush1.msra.mxu0 0.0
        %1077 = vmatprep.subr.mxu0 0.0
        %1078 = vmatpush1.msra.mxu0 0.0
        %1079 = vmatprep.subr.mxu0 0.0
        %1080 = vmatpush1.msra.mxu0 0.0
        %1081 = vmatprep.subr.mxu0 0.0
        %1082 = vmatpush1.msra.mxu0 0.0
        %1083 = vmatprep.subr.mxu0 0.0
        %1084 = vmatpush1.msra.mxu0 0.0
        %1085 = vmatprep.subr.mxu0 0.0
        %1086 = vmatpush1.msra.mxu0 0.0
        %1087 = vmatprep.subr.mxu0 0.0
        %v1088 = vand.u32 %v551, 4294901760
        %1089 = vmatpush1.msra.mxu0 %v1088
        %1090 = vmatprep.subr.mxu0 0.0
        %v1091 = vand.u32 %v550, 4294901760
        %1092 = vmatpush1.msra.mxu0 %v1091
        %1093 = vmatprep.subr.mxu0 0.0
        %v1094 = vand.u32 %v549, 4294901760
        %1095 = vmatpush1.msra.mxu0 %v1094
        %1096 = vmatprep.subr.mxu0 0.0
        %v1097 = vand.u32 %v548, 4294901760
        %1098 = vmatpush1.msra.mxu0 %v1097
        %1099 = vmatprep.subr.mxu0 0.0
        %1100 = vmatpush2.msra.mxu0 0.0
        %1101 = vmatprep.subr.mxu0 0.0
        %1102 = vmatpush2.msra.mxu0 0.0
        %1103 = vmatprep.subr.mxu0 0.0
        %1104 = vmatpush2.msra.mxu0 0.0
        %1105 = vmatprep.subr.mxu0 0.0
        %1106 = vmatpush2.msra.mxu0 0.0
        %1107 = vmatprep.subr.mxu0 0.0
        %1108 = vmatpush2.msra.mxu0 0.0
        %1109 = vmatprep.subr.mxu0 0.0
        %1110 = vmatpush2.msra.mxu0 0.0
        %1111 = vmatprep.subr.mxu0 0.0
        %1112 = vmatpush2.msra.mxu0 0.0
        %1113 = vmatprep.subr.mxu0 0.0
        %1114 = vmatpush2.msra.mxu0 0.0
        %1115 = vmatprep.subr.mxu0 0.0
        %1116 = vmatpush2.msra.mxu0 0.0
        %1117 = vmatprep.subr.mxu0 0.0
        %1118 = vmatpush2.msra.mxu0 0.0
        %1119 = vmatprep.subr.mxu0 0.0
        %1120 = vmatpush2.msra.mxu0 0.0
        %1121 = vmatprep.subr.mxu0 0.0
        %1122 = vmatpush2.msra.mxu0 0.0
        %1123 = vmatprep.subr.mxu0 0.0
        %1124 = vmatpush2.msra.mxu0 0.0
        %1125 = vmatprep.subr.mxu0 0.0
        %1126 = vmatpush2.msra.mxu0 0.0
        %1127 = vmatprep.subr.mxu0 0.0
        %1128 = vmatpush2.msra.mxu0 0.0
        %1129 = vmatprep.subr.mxu0 0.0
        %1130 = vmatpush2.msra.mxu0 0.0
        %1131 = vmatprep.mubr.f32.mxu0 0.0
        %v1132 = vand.u32 %v1061, 4294901760
        %v1133 = vsub.f32 %v1061, %v1132
        %v1134 = vand.u32 %v1133, 4294901760
        %v1135 = vsub.f32 %v1133, %v1134
        %v1136 = vand.u32 %v1135, 4294901760
        %1137 = vmatmul.mubr.f32.gmra.mxu0 %v1136
        %v1138 = vpop.f32.mrf.mxu0
        %v1139 = vadd.f32 0.0, %v1138
        %v1140 = vpop.f32.mrf.mxu0
        %1141 = vdwg.mxu0
        %1142 = vmatprep.subr.mxu0 0.0
        %1143 = vmatpush1.msra.mxu0 0.0
        %1144 = vmatprep.subr.mxu0 0.0
        %1145 = vmatpush1.msra.mxu0 0.0
        %1146 = vmatprep.subr.mxu0 0.0
        %1147 = vmatpush1.msra.mxu0 0.0
        %1148 = vmatprep.subr.mxu0 0.0
        %1149 = vmatpush1.msra.mxu0 0.0
        %1150 = vmatprep.subr.mxu0 0.0
        %1151 = vmatpush1.msra.mxu0 0.0
        %1152 = vmatprep.subr.mxu0 0.0
        %1153 = vmatpush1.msra.mxu0 0.0
        %1154 = vmatprep.subr.mxu0 0.0
        %1155 = vmatpush1.msra.mxu0 0.0
        %1156 = vmatprep.subr.mxu0 0.0
        %1157 = vmatpush1.msra.mxu0 0.0
        %1158 = vmatprep.subr.mxu0 0.0
        %1159 = vmatpush1.msra.mxu0 0.0
        %1160 = vmatprep.subr.mxu0 0.0
        %1161 = vmatpush1.msra.mxu0 0.0
        %1162 = vmatprep.subr.mxu0 0.0
        %1163 = vmatpush1.msra.mxu0 0.0
        %1164 = vmatprep.subr.mxu0 0.0
        %1165 = vmatpush1.msra.mxu0 0.0
        %1166 = vmatprep.subr.mxu0 0.0
        %v1167 = vand.u32 %v551, 4294901760
        %v1168 = vsub.f32 %v551, %v1167
        %v1169 = vand.u32 %v1168, 4294901760
        %v1170 = vsub.f32 %v1168, %v1169
        %v1171 = vand.u32 %v1170, 4294901760
        %1172 = vmatpush1.msra.mxu0 %v1171
        %1173 = vmatprep.subr.mxu0 0.0
        %v1174 = vand.u32 %v550, 4294901760
        %v1175 = vsub.f32 %v550, %v1174
        %v1176 = vand.u32 %v1175, 4294901760
        %v1177 = vsub.f32 %v1175, %v1176
        %v1178 = vand.u32 %v1177, 4294901760
        %1179 = vmatpush1.msra.mxu0 %v1178
        %1180 = vmatprep.subr.mxu0 0.0
        %v1181 = vand.u32 %v549, 4294901760
        %v1182 = vsub.f32 %v549, %v1181
        %v1183 = vand.u32 %v1182, 4294901760
        %v1184 = vsub.f32 %v1182, %v1183
        %v1185 = vand.u32 %v1184, 4294901760
        %1186 = vmatpush1.msra.mxu0 %v1185
        %1187 = vmatprep.subr.mxu0 0.0
        %v1188 = vand.u32 %v548, 4294901760
        %v1189 = vsub.f32 %v548, %v1188
        %v1190 = vand.u32 %v1189, 4294901760
        %v1191 = vsub.f32 %v1189, %v1190
        %v1192 = vand.u32 %v1191, 4294901760
        %1193 = vmatpush1.msra.mxu0 %v1192
        %1194 = vmatprep.subr.mxu0 0.0
        %1195 = vmatpush2.msra.mxu0 0.0
        %1196 = vmatprep.subr.mxu0 0.0
        %1197 = vmatpush2.msra.mxu0 0.0
        %1198 = vmatprep.subr.mxu0 0.0
        %1199 = vmatpush2.msra.mxu0 0.0
        %1200 = vmatprep.subr.mxu0 0.0
        %1201 = vmatpush2.msra.mxu0 0.0
        %1202 = vmatprep.subr.mxu0 0.0
        %1203 = vmatpush2.msra.mxu0 0.0
        %1204 = vmatprep.subr.mxu0 0.0
        %1205 = vmatpush2.msra.mxu0 0.0
        %1206 = vmatprep.subr.mxu0 0.0
        %1207 = vmatpush2.msra.mxu0 0.0
        %1208 = vmatprep.subr.mxu0 0.0
        %1209 = vmatpush2.msra.mxu0 0.0
        %1210 = vmatprep.subr.mxu0 0.0
        %1211 = vmatpush2.msra.mxu0 0.0
        %1212 = vmatprep.subr.mxu0 0.0
        %1213 = vmatpush2.msra.mxu0 0.0
        %1214 = vmatprep.subr.mxu0 0.0
        %1215 = vmatpush2.msra.mxu0 0.0
        %1216 = vmatprep.subr.mxu0 0.0
        %1217 = vmatpush2.msra.mxu0 0.0
        %1218 = vmatprep.subr.mxu0 0.0
        %1219 = vmatpush2.msra.mxu0 0.0
        %1220 = vmatprep.subr.mxu0 0.0
        %1221 = vmatpush2.msra.mxu0 0.0
        %1222 = vmatprep.subr.mxu0 0.0
        %1223 = vmatpush2.msra.mxu0 0.0
        %1224 = vmatprep.subr.mxu0 0.0
        %1225 = vmatpush2.msra.mxu0 0.0
        %1226 = vmatprep.mubr.f32.mxu0 0.0
        %v1227 = vand.u32 %v1061, 4294901760
        %1228 = vmatmul.mubr.f32.gmra.mxu0 %v1227
        %v1229 = vpop.f32.mrf.mxu0
        %v1230 = vadd.f32 %v1139, %v1229
        %v1231 = vpop.f32.mrf.mxu0
        %1232 = vdwg.mxu0
        %1233 = vmatprep.subr.mxu0 0.0
        %1234 = vmatpush1.msra.mxu0 0.0
        %1235 = vmatprep.subr.mxu0 0.0
        %1236 = vmatpush1.msra.mxu0 0.0
        %1237 = vmatprep.subr.mxu0 0.0
        %1238 = vmatpush1.msra.mxu0 0.0
        %1239 = vmatprep.subr.mxu0 0.0
        %1240 = vmatpush1.msra.mxu0 0.0
        %1241 = vmatprep.subr.mxu0 0.0
        %1242 = vmatpush1.msra.mxu0 0.0
        %1243 = vmatprep.subr.mxu0 0.0
        %1244 = vmatpush1.msra.mxu0 0.0
        %1245 = vmatprep.subr.mxu0 0.0
        %1246 = vmatpush1.msra.mxu0 0.0
        %1247 = vmatprep.subr.mxu0 0.0
        %1248 = vmatpush1.msra.mxu0 0.0
        %1249 = vmatprep.subr.mxu0 0.0
        %1250 = vmatpush1.msra.mxu0 0.0
        %1251 = vmatprep.subr.mxu0 0.0
        %1252 = vmatpush1.msra.mxu0 0.0
        %1253 = vmatprep.subr.mxu0 0.0
        %1254 = vmatpush1.msra.mxu0 0.0
        %1255 = vmatprep.subr.mxu0 0.0
        %1256 = vmatpush1.msra.mxu0 0.0
        %1257 = vmatprep.subr.mxu0 0.0
        %v1258 = vand.u32 %v551, 4294901760
        %v1259 = vsub.f32 %v551, %v1258
        %1260 = vmatpush1.msra.mxu0 %v1259
        %1261 = vmatprep.subr.mxu0 0.0
        %v1262 = vand.u32 %v550, 4294901760
        %v1263 = vsub.f32 %v550, %v1262
        %1264 = vmatpush1.msra.mxu0 %v1263
        %1265 = vmatprep.subr.mxu0 0.0
        %v1266 = vand.u32 %v549, 4294901760
        %v1267 = vsub.f32 %v549, %v1266
        %1268 = vmatpush1.msra.mxu0 %v1267
        %1269 = vmatprep.subr.mxu0 0.0
        %v1270 = vand.u32 %v548, 4294901760
        %v1271 = vsub.f32 %v548, %v1270
        %1272 = vmatpush1.msra.mxu0 %v1271
        %1273 = vmatprep.subr.mxu0 0.0
        %1274 = vmatpush2.msra.mxu0 0.0
        %1275 = vmatprep.subr.mxu0 0.0
        %1276 = vmatpush2.msra.mxu0 0.0
        %1277 = vmatprep.subr.mxu0 0.0
        %1278 = vmatpush2.msra.mxu0 0.0
        %1279 = vmatprep.subr.mxu0 0.0
        %1280 = vmatpush2.msra.mxu0 0.0
        %1281 = vmatprep.subr.mxu0 0.0
        %1282 = vmatpush2.msra.mxu0 0.0
        %1283 = vmatprep.subr.mxu0 0.0
        %1284 = vmatpush2.msra.mxu0 0.0
        %1285 = vmatprep.subr.mxu0 0.0
        %1286 = vmatpush2.msra.mxu0 0.0
        %1287 = vmatprep.subr.mxu0 0.0
        %1288 = vmatpush2.msra.mxu0 0.0
        %1289 = vmatprep.subr.mxu0 0.0
        %1290 = vmatpush2.msra.mxu0 0.0
        %1291 = vmatprep.subr.mxu0 0.0
        %1292 = vmatpush2.msra.mxu0 0.0
        %1293 = vmatprep.subr.mxu0 0.0
        %1294 = vmatpush2.msra.mxu0 0.0
        %1295 = vmatprep.subr.mxu0 0.0
        %1296 = vmatpush2.msra.mxu0 0.0
        %1297 = vmatprep.subr.mxu0 0.0
        %1298 = vmatpush2.msra.mxu0 0.0
        %1299 = vmatprep.subr.mxu0 0.0
        %1300 = vmatpush2.msra.mxu0 0.0
        %1301 = vmatprep.subr.mxu0 0.0
        %1302 = vmatpush2.msra.mxu0 0.0
        %1303 = vmatprep.subr.mxu0 0.0
        %1304 = vmatpush2.msra.mxu0 0.0
        %1305 = vmatprep.mubr.f32.mxu0 0.0
        %v1306 = vand.u32 %v1061, 4294901760
        %v1307 = vsub.f32 %v1061, %v1306
        %1308 = vmatmul.mubr.f32.gmra.mxu0 %v1307
        %v1309 = vpop.f32.mrf.mxu0
        %v1310 = vadd.f32 %v1230, %v1309
        %v1311 = vpop.f32.mrf.mxu0
        %1312 = vdwg.mxu0
        %1313 = vmatprep.subr.mxu0 0.0
        %1314 = vmatpush1.msra.mxu0 0.0
        %1315 = vmatprep.subr.mxu0 0.0
        %1316 = vmatpush1.msra.mxu0 0.0
        %1317 = vmatprep.subr.mxu0 0.0
        %1318 = vmatpush1.msra.mxu0 0.0
        %1319 = vmatprep.subr.mxu0 0.0
        %1320 = vmatpush1.msra.mxu0 0.0
        %1321 = vmatprep.subr.mxu0 0.0
        %1322 = vmatpush1.msra.mxu0 0.0
        %1323 = vmatprep.subr.mxu0 0.0
        %1324 = vmatpush1.msra.mxu0 0.0
        %1325 = vmatprep.subr.mxu0 0.0
        %1326 = vmatpush1.msra.mxu0 0.0
        %1327 = vmatprep.subr.mxu0 0.0
        %1328 = vmatpush1.msra.mxu0 0.0
        %1329 = vmatprep.subr.mxu0 0.0
        %1330 = vmatpush1.msra.mxu0 0.0
        %1331 = vmatprep.subr.mxu0 0.0
        %1332 = vmatpush1.msra.mxu0 0.0
        %1333 = vmatprep.subr.mxu0 0.0
        %1334 = vmatpush1.msra.mxu0 0.0
        %1335 = vmatprep.subr.mxu0 0.0
        %1336 = vmatpush1.msra.mxu0 0.0
        %1337 = vmatprep.subr.mxu0 0.0
        %v1338 = vand.u32 %v551, 4294901760
        %1339 = vmatpush1.msra.mxu0 %v1338
        %1340 = vmatprep.subr.mxu0 0.0
        %v1341 = vand.u32 %v550, 4294901760
        %1342 = vmatpush1.msra.mxu0 %v1341
        %1343 = vmatprep.subr.mxu0 0.0
        %v1344 = vand.u32 %v549, 4294901760
        %1345 = vmatpush1.msra.mxu0 %v1344
        %1346 = vmatprep.subr.mxu0 0.0
        %v1347 = vand.u32 %v548, 4294901760
        %1348 = vmatpush1.msra.mxu0 %v1347
        %1349 = vmatprep.subr.mxu0 0.0
        %1350 = vmatpush2.msra.mxu0 0.0
        %1351 = vmatprep.subr.mxu0 0.0
        %1352 = vmatpush2.msra.mxu0 0.0
        %1353 = vmatprep.subr.mxu0 0.0
        %1354 = vmatpush2.msra.mxu0 0.0
        %1355 = vmatprep.subr.mxu0 0.0
        %1356 = vmatpush2.msra.mxu0 0.0
        %1357 = vmatprep.subr.mxu0 0.0
        %1358 = vmatpush2.msra.mxu0 0.0
        %1359 = vmatprep.subr.mxu0 0.0
        %1360 = vmatpush2.msra.mxu0 0.0
        %1361 = vmatprep.subr.mxu0 0.0
        %1362 = vmatpush2.msra.mxu0 0.0
        %1363 = vmatprep.subr.mxu0 0.0
        %1364 = vmatpush2.msra.mxu0 0.0
        %1365 = vmatprep.subr.mxu0 0.0
        %1366 = vmatpush2.msra.mxu0 0.0
        %1367 = vmatprep.subr.mxu0 0.0
        %1368 = vmatpush2.msra.mxu0 0.0
        %1369 = vmatprep.subr.mxu0 0.0
        %1370 = vmatpush2.msra.mxu0 0.0
        %1371 = vmatprep.subr.mxu0 0.0
        %1372 = vmatpush2.msra.mxu0 0.0
        %1373 = vmatprep.subr.mxu0 0.0
        %1374 = vmatpush2.msra.mxu0 0.0
        %1375 = vmatprep.subr.mxu0 0.0
        %1376 = vmatpush2.msra.mxu0 0.0
        %1377 = vmatprep.subr.mxu0 0.0
        %1378 = vmatpush2.msra.mxu0 0.0
        %1379 = vmatprep.subr.mxu0 0.0
        %1380 = vmatpush2.msra.mxu0 0.0
        %1381 = vmatprep.mubr.f32.mxu0 0.0
        %v1382 = vand.u32 %v1061, 4294901760
        %v1383 = vsub.f32 %v1061, %v1382
        %v1384 = vand.u32 %v1383, 4294901760
        %1385 = vmatmul.mubr.f32.gmra.mxu0 %v1384
        %v1386 = vpop.f32.mrf.mxu0
        %v1387 = vadd.f32 %v1310, %v1386
        %v1388 = vpop.f32.mrf.mxu0
        %1389 = vdwg.mxu0
        %1390 = vmatprep.subr.mxu0 0.0
        %1391 = vmatpush1.msra.mxu0 0.0
        %1392 = vmatprep.subr.mxu0 0.0
        %1393 = vmatpush1.msra.mxu0 0.0
        %1394 = vmatprep.subr.mxu0 0.0
        %1395 = vmatpush1.msra.mxu0 0.0
        %1396 = vmatprep.subr.mxu0 0.0
        %1397 = vmatpush1.msra.mxu0 0.0
        %1398 = vmatprep.subr.mxu0 0.0
        %1399 = vmatpush1.msra.mxu0 0.0
        %1400 = vmatprep.subr.mxu0 0.0
        %1401 = vmatpush1.msra.mxu0 0.0
        %1402 = vmatprep.subr.mxu0 0.0
        %1403 = vmatpush1.msra.mxu0 0.0
        %1404 = vmatprep.subr.mxu0 0.0
        %1405 = vmatpush1.msra.mxu0 0.0
        %1406 = vmatprep.subr.mxu0 0.0
        %1407 = vmatpush1.msra.mxu0 0.0
        %1408 = vmatprep.subr.mxu0 0.0
        %1409 = vmatpush1.msra.mxu0 0.0
        %1410 = vmatprep.subr.mxu0 0.0
        %1411 = vmatpush1.msra.mxu0 0.0
        %1412 = vmatprep.subr.mxu0 0.0
        %1413 = vmatpush1.msra.mxu0 0.0
        %1414 = vmatprep.subr.mxu0 0.0
        %v1415 = vand.u32 %v551, 4294901760
        %v1416 = vsub.f32 %v551, %v1415
        %v1417 = vand.u32 %v1416, 4294901760
        %1418 = vmatpush1.msra.mxu0 %v1417
        %1419 = vmatprep.subr.mxu0 0.0
        %v1420 = vand.u32 %v550, 4294901760
        %v1421 = vsub.f32 %v550, %v1420
        %v1422 = vand.u32 %v1421, 4294901760
        %1423 = vmatpush1.msra.mxu0 %v1422
        %1424 = vmatprep.subr.mxu0 0.0
        %v1425 = vand.u32 %v549, 4294901760
        %v1426 = vsub.f32 %v549, %v1425
        %v1427 = vand.u32 %v1426, 4294901760
        %1428 = vmatpush1.msra.mxu0 %v1427
        %1429 = vmatprep.subr.mxu0 0.0
        %v1430 = vand.u32 %v548, 4294901760
        %v1431 = vsub.f32 %v548, %v1430
        %v1432 = vand.u32 %v1431, 4294901760
        %1433 = vmatpush1.msra.mxu0 %v1432
        %1434 = vmatprep.subr.mxu0 0.0
        %1435 = vmatpush2.msra.mxu0 0.0
        %1436 = vmatprep.subr.mxu0 0.0
        %1437 = vmatpush2.msra.mxu0 0.0
        %1438 = vmatprep.subr.mxu0 0.0
        %1439 = vmatpush2.msra.mxu0 0.0
        %1440 = vmatprep.subr.mxu0 0.0
        %1441 = vmatpush2.msra.mxu0 0.0
        %1442 = vmatprep.subr.mxu0 0.0
        %1443 = vmatpush2.msra.mxu0 0.0
        %1444 = vmatprep.subr.mxu0 0.0
        %1445 = vmatpush2.msra.mxu0 0.0
        %1446 = vmatprep.subr.mxu0 0.0
        %1447 = vmatpush2.msra.mxu0 0.0
        %1448 = vmatprep.subr.mxu0 0.0
        %1449 = vmatpush2.msra.mxu0 0.0
        %1450 = vmatprep.subr.mxu0 0.0
        %1451 = vmatpush2.msra.mxu0 0.0
        %1452 = vmatprep.subr.mxu0 0.0
        %1453 = vmatpush2.msra.mxu0 0.0
        %1454 = vmatprep.subr.mxu0 0.0
        %1455 = vmatpush2.msra.mxu0 0.0
        %1456 = vmatprep.subr.mxu0 0.0
        %1457 = vmatpush2.msra.mxu0 0.0
        %1458 = vmatprep.subr.mxu0 0.0
        %1459 = vmatpush2.msra.mxu0 0.0
        %1460 = vmatprep.subr.mxu0 0.0
        %1461 = vmatpush2.msra.mxu0 0.0
        %1462 = vmatprep.subr.mxu0 0.0
        %1463 = vmatpush2.msra.mxu0 0.0
        %1464 = vmatprep.subr.mxu0 0.0
        %1465 = vmatpush2.msra.mxu0 0.0
        %1466 = vmatprep.mubr.f32.mxu0 0.0
        %v1467 = vand.u32 %v1061, 4294901760
        %1468 = vmatmul.mubr.f32.gmra.mxu0 %v1467
        %v1469 = vpop.f32.mrf.mxu0
        %v1470 = vadd.f32 %v1387, %v1469
        %v1471 = vpop.f32.mrf.mxu0
        %1472 = vdwg.mxu0
        %1473 = vmatprep.subr.mxu0 0.0
        %1474 = vmatpush1.msra.mxu0 0.0
        %1475 = vmatprep.subr.mxu0 0.0
        %1476 = vmatpush1.msra.mxu0 0.0
        %1477 = vmatprep.subr.mxu0 0.0
        %1478 = vmatpush1.msra.mxu0 0.0
        %1479 = vmatprep.subr.mxu0 0.0
        %1480 = vmatpush1.msra.mxu0 0.0
        %1481 = vmatprep.subr.mxu0 0.0
        %1482 = vmatpush1.msra.mxu0 0.0
        %1483 = vmatprep.subr.mxu0 0.0
        %1484 = vmatpush1.msra.mxu0 0.0
        %1485 = vmatprep.subr.mxu0 0.0
        %1486 = vmatpush1.msra.mxu0 0.0
        %1487 = vmatprep.subr.mxu0 0.0
        %1488 = vmatpush1.msra.mxu0 0.0
        %1489 = vmatprep.subr.mxu0 0.0
        %1490 = vmatpush1.msra.mxu0 0.0
        %1491 = vmatprep.subr.mxu0 0.0
        %1492 = vmatpush1.msra.mxu0 0.0
        %1493 = vmatprep.subr.mxu0 0.0
        %1494 = vmatpush1.msra.mxu0 0.0
        %1495 = vmatprep.subr.mxu0 0.0
        %1496 = vmatpush1.msra.mxu0 0.0
        %1497 = vmatprep.subr.mxu0 0.0
        %v1498 = vand.u32 %v551, 4294901760
        %1499 = vmatpush1.msra.mxu0 %v1498
        %1500 = vmatprep.subr.mxu0 0.0
        %v1501 = vand.u32 %v550, 4294901760
        %1502 = vmatpush1.msra.mxu0 %v1501
        %1503 = vmatprep.subr.mxu0 0.0
        %v1504 = vand.u32 %v549, 4294901760
        %1505 = vmatpush1.msra.mxu0 %v1504
        %1506 = vmatprep.subr.mxu0 0.0
        %v1507 = vand.u32 %v548, 4294901760
        %1508 = vmatpush1.msra.mxu0 %v1507
        %1509 = vmatprep.subr.mxu0 0.0
        %1510 = vmatpush2.msra.mxu0 0.0
        %1511 = vmatprep.subr.mxu0 0.0
        %1512 = vmatpush2.msra.mxu0 0.0
        %1513 = vmatprep.subr.mxu0 0.0
        %1514 = vmatpush2.msra.mxu0 0.0
        %1515 = vmatprep.subr.mxu0 0.0
        %1516 = vmatpush2.msra.mxu0 0.0
        %1517 = vmatprep.subr.mxu0 0.0
        %1518 = vmatpush2.msra.mxu0 0.0
        %1519 = vmatprep.subr.mxu0 0.0
        %1520 = vmatpush2.msra.mxu0 0.0
        %1521 = vmatprep.subr.mxu0 0.0
        %1522 = vmatpush2.msra.mxu0 0.0
        %1523 = vmatprep.subr.mxu0 0.0
        %1524 = vmatpush2.msra.mxu0 0.0
        %1525 = vmatprep.subr.mxu0 0.0
        %1526 = vmatpush2.msra.mxu0 0.0
        %1527 = vmatprep.subr.mxu0 0.0
        %1528 = vmatpush2.msra.mxu0 0.0
        %1529 = vmatprep.subr.mxu0 0.0
        %1530 = vmatpush2.msra.mxu0 0.0
        %1531 = vmatprep.subr.mxu0 0.0
        %1532 = vmatpush2.msra.mxu0 0.0
        %1533 = vmatprep.subr.mxu0 0.0
        %1534 = vmatpush2.msra.mxu0 0.0
        %1535 = vmatprep.subr.mxu0 0.0
        %1536 = vmatpush2.msra.mxu0 0.0
        %1537 = vmatprep.subr.mxu0 0.0
        %1538 = vmatpush2.msra.mxu0 0.0
        %1539 = vmatprep.subr.mxu0 0.0
        %1540 = vmatpush2.msra.mxu0 0.0
        %1541 = vmatprep.mubr.f32.mxu0 0.0
        %v1542 = vand.u32 %v1061, 4294901760
        %1543 = vmatmul.mubr.f32.gmra.mxu0 %v1542
        %v1544 = vpop.f32.mrf.mxu0
        %v1545 = vadd.f32 %v1470, %v1544
        %v1546 = vpop.f32.mrf.mxu0
        %1547 = vdwg.mxu0
        %v1549 = vlaneseq
        %v1550 = vshrl.u32 %v1549, 7
        %v1551 = vsub.s32 0, %v1550
        %v1552 = vrot.slane %v552, %v1551
        %v1554 = vmul.f32 %v1057, %v1552
        %v1555 = vsel %vm559, %v1554, 0.0
        %1556 = vadd.xlane.f32.xlu0 %v1555
        %v1557 = vpop.xlane.xlu0 %1556
        %v1558 = vld [vmem:[%s537] sm:$0xff]
        %v1559 = vcvt.s32.f32 %v1558
        %s1560 = sld [smem:[#allocation9]]
        %s1561 = sld [smem:[#allocation9 + $0x1]]
        %s1562 = ssub.f32 %s1561, %s1560
        %v1563 = vstv %s1562
        %v1564 = vmul.f32 %v1559, %v1563
        %v1565 = vstv %s1560
        %v1566 = vadd.f32 %v1565, %v1564
        %v1567 = vld [vmem:[%s453] sm:$0xff]
        %v1568 = vld [vmem:[%s453 + $0x8] sm:$0xff]
        %v1569 = vld [vmem:[%s453 + $0x10] sm:$0xff]
        %v1570 = vld [vmem:[%s453 + $0x18] sm:$0xff]
        %v1571 = vld [vmem:[%s453 + $0x20] sm:$0xff]
        %v1572 = vld [vmem:[%s453 + $0x28] sm:$0xff]
        %v1573 = vld [vmem:[%s453 + $0x30] sm:$0xff]
        %v1574 = vld [vmem:[%s453 + $0x38] sm:$0xff]
        %v1575 = vld [vmem:[%s453 + $0x40] sm:$0xff]
        %v1576 = vld [vmem:[%s453 + $0x48] sm:$0xff]
        %v1577 = vld [vmem:[%s453 + $0x50] sm:$0xff]
        %v1578 = vld [vmem:[%s453 + $0x58] sm:$0xff]
        %v1579 = vld [vmem:[%s453 + $0x60] sm:$0xff]
        %v1580 = vld [vmem:[%s453 + $0x68] sm:$0xff]
        %v1581 = vld [vmem:[%s453 + $0x70] sm:$0xff]
        %v1582 = vld [vmem:[%s453 + $0x78] sm:$0xff]
        %v1584 = vcombine.high %v1545, %v1545
        %v1586 = vunpack.c.l.s4 1966171168
        %v1587 = vunpack.c.0.s8 %v1586
        %v1588 = vlaneseq
        %v1589 = vshrl.u32 %v1588, 7
        %v1590 = vsub.s32 %v1587, %v1589
        %v1591 = vrot.slane %v1545, %v1590
        %v1593 = vunpack.c.l.s4 1966171168
        %v1594 = vunpack.c.0.s8 %v1593
        %v1595 = vlaneseq
        %v1596 = vshrl.u32 %v1595, 7
        %v1597 = vsub.s32 %v1594, %v1596
        %v1598 = vrot.slane %v1584, %v1597
        %v1599 = vcombine.high %v1591, %v1591
        %v1600 = vcombine.high %v1598, %v1598
        %v1602 = vunpack.c.l.s4 1966171168
        %v1603 = vunpack.c.0.s8 %v1602
        %v1604 = vlaneseq
        %v1605 = vshrl.u32 %v1604, 7
        %v1606 = vsub.s32 %v1603, %v1605
        %v1607 = vrot.slane %v1591, %v1606
        %v1609 = vunpack.c.l.s4 1966171168
        %v1610 = vunpack.c.0.s8 %v1609
        %v1611 = vlaneseq
        %v1612 = vshrl.u32 %v1611, 7
        %v1613 = vsub.s32 %v1610, %v1612
        %v1614 = vrot.slane %v1598, %v1613
        %v1616 = vunpack.c.l.s4 1966171168
        %v1617 = vunpack.c.0.s8 %v1616
        %v1618 = vlaneseq
        %v1619 = vshrl.u32 %v1618, 7
        %v1620 = vsub.s32 %v1617, %v1619
        %v1621 = vrot.slane %v1599, %v1620
        %v1623 = vunpack.c.l.s4 1966171168
        %v1624 = vunpack.c.0.s8 %v1623
        %v1625 = vlaneseq
        %v1626 = vshrl.u32 %v1625, 7
        %v1627 = vsub.s32 %v1624, %v1626
        %v1628 = vrot.slane %v1600, %v1627
        %v1629 = vcombine.high %v1607, %v1607
        %v1630 = vcombine.high %v1614, %v1614
        %v1631 = vcombine.high %v1621, %v1621
        %v1632 = vcombine.high %v1628, %v1628
        %v1633 = vlaneseq
        %v1634 = vshrl.u32 %v1633, 7
        %v1635 = vsub.s32 0, %v1634
        %v1636 = vrot.slane %v1607, %v1635
        %v1637 = vlaneseq
        %v1638 = vshrl.u32 %v1637, 7
        %v1639 = vsub.s32 0, %v1638
        %v1640 = vrot.slane %v1621, %v1639
        %v1641 = vlaneseq
        %v1642 = vshrl.u32 %v1641, 7
        %v1643 = vsub.s32 0, %v1642
        %v1644 = vrot.slane %v1629, %v1643
        %v1645 = vlaneseq
        %v1646 = vshrl.u32 %v1645, 7
        %v1647 = vsub.s32 0, %v1646
        %v1648 = vrot.slane %v1631, %v1647
        %v1649 = vlaneseq
        %v1650 = vshrl.u32 %v1649, 7
        %v1651 = vsub.s32 0, %v1650
        %v1652 = vrot.slane %v1614, %v1651
        %v1653 = vlaneseq
        %v1654 = vshrl.u32 %v1653, 7
        %v1655 = vsub.s32 0, %v1654
        %v1656 = vrot.slane %v1628, %v1655
        %v1657 = vlaneseq
        %v1658 = vshrl.u32 %v1657, 7
        %v1659 = vsub.s32 0, %v1658
        %v1660 = vrot.slane %v1630, %v1659
        %v1661 = vlaneseq
        %v1662 = vshrl.u32 %v1661, 7
        %v1663 = vsub.s32 0, %v1662
        %v1664 = vrot.slane %v1632, %v1663
        %v1673 = vmul.f32 %v1567, %v1636
        %v1674 = vmul.f32 %v1568, %v1636
        %v1675 = vmul.f32 %v1569, %v1640
        %v1676 = vmul.f32 %v1570, %v1640
        %v1677 = vmul.f32 %v1571, %v1644
        %v1678 = vmul.f32 %v1572, %v1644
        %v1679 = vmul.f32 %v1573, %v1648
        %v1680 = vmul.f32 %v1574, %v1648
        %v1681 = vmul.f32 %v1575, %v1652
        %v1682 = vmul.f32 %v1576, %v1652
        %v1683 = vmul.f32 %v1577, %v1656
        %v1684 = vmul.f32 %v1578, %v1656
        %v1685 = vmul.f32 %v1579, %v1660
        %v1686 = vmul.f32 %v1580, %v1660
        %v1687 = vmul.f32 %v1581, %v1664
        %v1688 = vmul.f32 %v1582, %v1664
        %v1689 = vsel %vm559, %v1673, 0.0
        %1690 = vadd.xlane.f32.xlu0 %v1689
        %v1691 = vpop.xlane.xlu0 %1690
        %v1692 = vsel %vm559, %v1674, 0.0
        %1693 = vadd.xlane.f32.xlu0 %v1692
        %v1694 = vpop.xlane.xlu0 %1693
        %v1695 = vsel %vm559, %v1675, 0.0
        %1696 = vadd.xlane.f32.xlu0 %v1695
        %v1697 = vpop.xlane.xlu0 %1696
        %v1698 = vsel %vm559, %v1676, 0.0
        %1699 = vadd.xlane.f32.xlu0 %v1698
        %v1700 = vpop.xlane.xlu0 %1699
        %v1701 = vsel %vm559, %v1677, 0.0
        %1702 = vadd.xlane.f32.xlu0 %v1701
        %v1703 = vpop.xlane.xlu0 %1702
        %v1704 = vsel %vm559, %v1678, 0.0
        %1705 = vadd.xlane.f32.xlu0 %v1704
        %v1706 = vpop.xlane.xlu0 %1705
        %v1707 = vsel %vm559, %v1679, 0.0
        %1708 = vadd.xlane.f32.xlu0 %v1707
        %v1709 = vpop.xlane.xlu0 %1708
        %v1710 = vsel %vm559, %v1680, 0.0
        %1711 = vadd.xlane.f32.xlu0 %v1710
        %v1712 = vpop.xlane.xlu0 %1711
        %v1713 = vsel %vm559, %v1681, 0.0
        %1714 = vadd.xlane.f32.xlu0 %v1713
        %v1715 = vpop.xlane.xlu0 %1714
        %v1716 = vsel %vm559, %v1682, 0.0
        %1717 = vadd.xlane.f32.xlu0 %v1716
        %v1718 = vpop.xlane.xlu0 %1717
        %v1719 = vsel %vm559, %v1683, 0.0
        %1720 = vadd.xlane.f32.xlu0 %v1719
        %v1721 = vpop.xlane.xlu0 %1720
        %v1722 = vsel %vm559, %v1684, 0.0
        %1723 = vadd.xlane.f32.xlu0 %v1722
        %v1724 = vpop.xlane.xlu0 %1723
        %v1725 = vsel %vm559, %v1685, 0.0
        %1726 = vadd.xlane.f32.xlu0 %v1725
        %v1727 = vpop.xlane.xlu0 %1726
        %v1728 = vsel %vm559, %v1686, 0.0
        %1729 = vadd.xlane.f32.xlu0 %v1728
        %v1730 = vpop.xlane.xlu0 %1729
        %v1731 = vsel %vm559, %v1687, 0.0
        %1732 = vadd.xlane.f32.xlu0 %v1731
        %v1733 = vpop.xlane.xlu0 %1732
        %v1734 = vsel %vm559, %v1688, 0.0
        %1735 = vadd.xlane.f32.xlu0 %v1734
        %v1736 = vpop.xlane.xlu0 %1735
        %v1738 = vlaneseq
        %v1739 = vshrl.u32 %v1738, 7
        %v1740 = vsub.s32 0, %v1739
        %v1741 = vrot.slane %v1557, %v1740
        %v1742 = vlaneseq
        %v1743 = vshrl.u32 %v1742, 7
        %v1744 = vsub.s32 1, %v1743
        %v1745 = vrot.slane %v1557, %v1744
        %v1746 = vlaneseq
        %v1747 = vshrl.u32 %v1746, 7
        %v1748 = vsub.s32 2, %v1747
        %v1749 = vrot.slane %v1557, %v1748
        %v1750 = vlaneseq
        %v1751 = vshrl.u32 %v1750, 7
        %v1752 = vsub.s32 3, %v1751
        %v1753 = vrot.slane %v1557, %v1752
        %v1754 = vlaneseq
        %v1755 = vshrl.u32 %v1754, 7
        %v1756 = vsub.s32 4, %v1755
        %v1757 = vrot.slane %v1557, %v1756
        %v1758 = vlaneseq
        %v1759 = vshrl.u32 %v1758, 7
        %v1760 = vsub.s32 5, %v1759
        %v1761 = vrot.slane %v1557, %v1760
        %v1762 = vlaneseq
        %v1763 = vshrl.u32 %v1762, 7
        %v1764 = vsub.s32 6, %v1763
        %v1765 = vrot.slane %v1557, %v1764
        %v1766 = vlaneseq
        %v1767 = vshrl.u32 %v1766, 7
        %v1768 = vsub.s32 7, %v1767
        %v1769 = vrot.slane %v1557, %v1768
        %v1778 = vadd.f32 %v1691, %v1741
        %v1779 = vadd.f32 %v1694, %v1741
        %v1780 = vadd.f32 %v1697, %v1745
        %v1781 = vadd.f32 %v1700, %v1745
        %v1782 = vadd.f32 %v1703, %v1749
        %v1783 = vadd.f32 %v1706, %v1749
        %v1784 = vadd.f32 %v1709, %v1753
        %v1785 = vadd.f32 %v1712, %v1753
        %v1786 = vadd.f32 %v1715, %v1757
        %v1787 = vadd.f32 %v1718, %v1757
        %v1788 = vadd.f32 %v1721, %v1761
        %v1789 = vadd.f32 %v1724, %v1761
        %v1790 = vadd.f32 %v1727, %v1765
        %v1791 = vadd.f32 %v1730, %v1765
        %v1792 = vadd.f32 %v1733, %v1769
        %v1793 = vadd.f32 %v1736, %v1769
        %v1795 = vlaneseq
        %v1796 = vshrl.u32 %v1795, 7
        %v1797 = vsub.s32 0, %v1796
        %v1798 = vrot.slane %v1566, %v1797
        %1800 = vbcast.lane.b32.xlu0 %v1798, 256
        %v1801 = vpop.permute.xlu0 %1800
        %s1803 = sor.u32 256, 8
        %1804 = vbcast.lane.b32.xlu0 %v1798, %s1803
        %v1805 = vpop.permute.xlu0 %1804
        %v1806 = vlaneseq
        %v1807 = vshrl.u32 %v1806, 7
        %v1808 = vsub.s32 1, %v1807
        %v1809 = vrot.slane %v1566, %v1808
        %1811 = vbcast.lane.b32.xlu0 %v1809, 256
        %v1812 = vpop.permute.xlu0 %1811
        %s1814 = sor.u32 256, 8
        %1815 = vbcast.lane.b32.xlu0 %v1809, %s1814
        %v1816 = vpop.permute.xlu0 %1815
        %v1817 = vlaneseq
        %v1818 = vshrl.u32 %v1817, 7
        %v1819 = vsub.s32 2, %v1818
        %v1820 = vrot.slane %v1566, %v1819
        %1822 = vbcast.lane.b32.xlu0 %v1820, 256
        %v1823 = vpop.permute.xlu0 %1822
        %s1825 = sor.u32 256, 8
        %1826 = vbcast.lane.b32.xlu0 %v1820, %s1825
        %v1827 = vpop.permute.xlu0 %1826
        %v1828 = vlaneseq
        %v1829 = vshrl.u32 %v1828, 7
        %v1830 = vsub.s32 3, %v1829
        %v1831 = vrot.slane %v1566, %v1830
        %1833 = vbcast.lane.b32.xlu0 %v1831, 256
        %v1834 = vpop.permute.xlu0 %1833
        %s1836 = sor.u32 256, 8
        %1837 = vbcast.lane.b32.xlu0 %v1831, %s1836
        %v1838 = vpop.permute.xlu0 %1837
        %v1839 = vlaneseq
        %v1840 = vshrl.u32 %v1839, 7
        %v1841 = vsub.s32 4, %v1840
        %v1842 = vrot.slane %v1566, %v1841
        %1844 = vbcast.lane.b32.xlu0 %v1842, 256
        %v1845 = vpop.permute.xlu0 %1844
        %s1847 = sor.u32 256, 8
        %1848 = vbcast.lane.b32.xlu0 %v1842, %s1847
        %v1849 = vpop.permute.xlu0 %1848
        %v1850 = vlaneseq
        %v1851 = vshrl.u32 %v1850, 7
        %v1852 = vsub.s32 5, %v1851
        %v1853 = vrot.slane %v1566, %v1852
        %1855 = vbcast.lane.b32.xlu0 %v1853, 256
        %v1856 = vpop.permute.xlu0 %1855
        %s1858 = sor.u32 256, 8
        %1859 = vbcast.lane.b32.xlu0 %v1853, %s1858
        %v1860 = vpop.permute.xlu0 %1859
        %v1861 = vlaneseq
        %v1862 = vshrl.u32 %v1861, 7
        %v1863 = vsub.s32 6, %v1862
        %v1864 = vrot.slane %v1566, %v1863
        %1866 = vbcast.lane.b32.xlu0 %v1864, 256
        %v1867 = vpop.permute.xlu0 %1866
        %s1869 = sor.u32 256, 8
        %1870 = vbcast.lane.b32.xlu0 %v1864, %s1869
        %v1871 = vpop.permute.xlu0 %1870
        %v1872 = vlaneseq
        %v1873 = vshrl.u32 %v1872, 7
        %v1874 = vsub.s32 7, %v1873
        %v1875 = vrot.slane %v1566, %v1874
        %1877 = vbcast.lane.b32.xlu0 %v1875, 256
        %v1878 = vpop.permute.xlu0 %1877
        %s1880 = sor.u32 256, 8
        %1881 = vbcast.lane.b32.xlu0 %v1875, %s1880
        %v1882 = vpop.permute.xlu0 %1881
        %v1899 = vadd.f32 %v1778, %v1801
        %v1900 = vadd.f32 %v1779, %v1805
        %v1901 = vadd.f32 %v1780, %v1812
        %v1902 = vadd.f32 %v1781, %v1816
        %v1903 = vadd.f32 %v1782, %v1823
        %v1904 = vadd.f32 %v1783, %v1827
        %v1905 = vadd.f32 %v1784, %v1834
        %v1906 = vadd.f32 %v1785, %v1838
        %v1907 = vadd.f32 %v1786, %v1845
        %v1908 = vadd.f32 %v1787, %v1849
        %v1909 = vadd.f32 %v1788, %v1856
        %v1910 = vadd.f32 %v1789, %v1860
        %v1911 = vadd.f32 %v1790, %v1867
        %v1912 = vadd.f32 %v1791, %v1871
        %v1913 = vadd.f32 %v1792, %v1878
        %v1914 = vadd.f32 %v1793, %v1882
        %v1915 = vld [vmem:[%s533] sm:$0xff]
        %v1916 = vsub.f32 1.0, %v1915
        %v1917 = vmul.f32 %v1916, 1e+30
        %v1919 = vlaneseq
        %v1920 = vshrl.u32 %v1919, 7
        %v1921 = vsub.s32 0, %v1920
        %v1922 = vrot.slane %v1917, %v1921
        %1924 = vbcast.lane.b32.xlu0 %v1922, 256
        %v1925 = vpop.permute.xlu0 %1924
        %s1927 = sor.u32 256, 8
        %1928 = vbcast.lane.b32.xlu0 %v1922, %s1927
        %v1929 = vpop.permute.xlu0 %1928
        %v1930 = vlaneseq
        %v1931 = vshrl.u32 %v1930, 7
        %v1932 = vsub.s32 1, %v1931
        %v1933 = vrot.slane %v1917, %v1932
        %1935 = vbcast.lane.b32.xlu0 %v1933, 256
        %v1936 = vpop.permute.xlu0 %1935
        %s1938 = sor.u32 256, 8
        %1939 = vbcast.lane.b32.xlu0 %v1933, %s1938
        %v1940 = vpop.permute.xlu0 %1939
        %v1941 = vlaneseq
        %v1942 = vshrl.u32 %v1941, 7
        %v1943 = vsub.s32 2, %v1942
        %v1944 = vrot.slane %v1917, %v1943
        %1946 = vbcast.lane.b32.xlu0 %v1944, 256
        %v1947 = vpop.permute.xlu0 %1946
        %s1949 = sor.u32 256, 8
        %1950 = vbcast.lane.b32.xlu0 %v1944, %s1949
        %v1951 = vpop.permute.xlu0 %1950
        %v1952 = vlaneseq
        %v1953 = vshrl.u32 %v1952, 7
        %v1954 = vsub.s32 3, %v1953
        %v1955 = vrot.slane %v1917, %v1954
        %1957 = vbcast.lane.b32.xlu0 %v1955, 256
        %v1958 = vpop.permute.xlu0 %1957
        %s1960 = sor.u32 256, 8
        %1961 = vbcast.lane.b32.xlu0 %v1955, %s1960
        %v1962 = vpop.permute.xlu0 %1961
        %v1963 = vlaneseq
        %v1964 = vshrl.u32 %v1963, 7
        %v1965 = vsub.s32 4, %v1964
        %v1966 = vrot.slane %v1917, %v1965
        %1968 = vbcast.lane.b32.xlu0 %v1966, 256
        %v1969 = vpop.permute.xlu0 %1968
        %s1971 = sor.u32 256, 8
        %1972 = vbcast.lane.b32.xlu0 %v1966, %s1971
        %v1973 = vpop.permute.xlu0 %1972
        %v1974 = vlaneseq
        %v1975 = vshrl.u32 %v1974, 7
        %v1976 = vsub.s32 5, %v1975
        %v1977 = vrot.slane %v1917, %v1976
        %1979 = vbcast.lane.b32.xlu0 %v1977, 256
        %v1980 = vpop.permute.xlu0 %1979
        %s1982 = sor.u32 256, 8
        %1983 = vbcast.lane.b32.xlu0 %v1977, %s1982
        %v1984 = vpop.permute.xlu0 %1983
        %v1985 = vlaneseq
        %v1986 = vshrl.u32 %v1985, 7
        %v1987 = vsub.s32 6, %v1986
        %v1988 = vrot.slane %v1917, %v1987
        %1990 = vbcast.lane.b32.xlu0 %v1988, 256
        %v1991 = vpop.permute.xlu0 %1990
        %s1993 = sor.u32 256, 8
        %1994 = vbcast.lane.b32.xlu0 %v1988, %s1993
        %v1995 = vpop.permute.xlu0 %1994
        %v1996 = vlaneseq
        %v1997 = vshrl.u32 %v1996, 7
        %v1998 = vsub.s32 7, %v1997
        %v1999 = vrot.slane %v1917, %v1998
        %2001 = vbcast.lane.b32.xlu0 %v1999, 256
        %v2002 = vpop.permute.xlu0 %2001
        %s2004 = sor.u32 256, 8
        %2005 = vbcast.lane.b32.xlu0 %v1999, %s2004
        %v2006 = vpop.permute.xlu0 %2005
        %v2023 = vsub.f32 %v1899, %v1925
        %v2024 = vsub.f32 %v1900, %v1929
        %v2025 = vsub.f32 %v1901, %v1936
        %v2026 = vsub.f32 %v1902, %v1940
        %v2027 = vsub.f32 %v1903, %v1947
        %v2028 = vsub.f32 %v1904, %v1951
        %v2029 = vsub.f32 %v1905, %v1958
        %v2030 = vsub.f32 %v1906, %v1962
        %v2031 = vsub.f32 %v1907, %v1969
        %v2032 = vsub.f32 %v1908, %v1973
        %v2033 = vsub.f32 %v1909, %v1980
        %v2034 = vsub.f32 %v1910, %v1984
        %v2035 = vsub.f32 %v1911, %v1991
        %v2036 = vsub.f32 %v1912, %v1995
        %v2037 = vsub.f32 %v1913, %v2002
        %v2038 = vsub.f32 %v1914, %v2006
        %2055 = vset.pattern.permute.xlu0 0
        %2056 = vperm.xlu0 %2055, %v2023
        %v2057 = vpop.permute.xlu0 %2056
        %2058 = vset.pattern.permute.xlu0 0
        %2059 = vperm.xlu0 %2058, %v2024
        %v2060 = vpop.permute.xlu0 %2059
        %2061 = vset.pattern.permute.xlu0 0
        %2062 = vperm.xlu0 %2061, %v2025
        %v2063 = vpop.permute.xlu0 %2062
        %2064 = vset.pattern.permute.xlu0 0
        %2065 = vperm.xlu0 %2064, %v2026
        %v2066 = vpop.permute.xlu0 %2065
        %2067 = vset.pattern.permute.xlu0 0
        %2068 = vperm.xlu0 %2067, %v2027
        %v2069 = vpop.permute.xlu0 %2068
        %2070 = vset.pattern.permute.xlu0 0
        %2071 = vperm.xlu0 %2070, %v2028
        %v2072 = vpop.permute.xlu0 %2071
        %2073 = vset.pattern.permute.xlu0 0
        %2074 = vperm.xlu0 %2073, %v2029
        %v2075 = vpop.permute.xlu0 %2074
        %2076 = vset.pattern.permute.xlu0 0
        %2077 = vperm.xlu0 %2076, %v2030
        %v2078 = vpop.permute.xlu0 %2077
        %2079 = vset.pattern.permute.xlu0 0
        %2080 = vperm.xlu0 %2079, %v2031
        %v2081 = vpop.permute.xlu0 %2080
        %2082 = vset.pattern.permute.xlu0 0
        %2083 = vperm.xlu0 %2082, %v2032
        %v2084 = vpop.permute.xlu0 %2083
        %2085 = vset.pattern.permute.xlu0 0
        %2086 = vperm.xlu0 %2085, %v2033
        %v2087 = vpop.permute.xlu0 %2086
        %2088 = vset.pattern.permute.xlu0 0
        %2089 = vperm.xlu0 %2088, %v2034
        %v2090 = vpop.permute.xlu0 %2089
        %2091 = vset.pattern.permute.xlu0 0
        %2092 = vperm.xlu0 %2091, %v2035
        %v2093 = vpop.permute.xlu0 %2092
        %2094 = vset.pattern.permute.xlu0 0
        %2095 = vperm.xlu0 %2094, %v2036
        %v2096 = vpop.permute.xlu0 %2095
        %2097 = vset.pattern.permute.xlu0 0
        %2098 = vperm.xlu0 %2097, %v2037
        %v2099 = vpop.permute.xlu0 %2098
        %2100 = vset.pattern.permute.xlu0 0
        %2101 = vperm.xlu0 %2100, %v2038
        %v2102 = vpop.permute.xlu0 %2101
        %v2103 = vlaneseq
        %v2104 = vand.u32 %v2103, 127
        %v2105 = vlaneseq
        %v2106 = vshrl.u32 %v2105, 7
        %v2107 = vsub.s32 %v2104, %v2106
        %v2108 = vrot.slane %v2057, %v2107
        %v2109 = vadd.s32 %v2104, 4294967288
        %v2110 = vlaneseq
        %v2111 = vshrl.u32 %v2110, 7
        %v2112 = vsub.s32 %v2109, %v2111
        %v2113 = vrot.slane %v2060, %v2112
        %vm2114 = vcmask 130112
        %v2115 = vsel %vm2114, %v2113, %v2108
        %v2116 = vlaneseq
        %v2117 = vshrl.u32 %v2116, 7
        %v2118 = vsub.s32 %v2104, %v2117
        %v2119 = vrot.slane %v2063, %v2118
        %v2120 = vlaneseq
        %v2121 = vshrl.u32 %v2120, 7
        %v2122 = vsub.s32 %v2109, %v2121
        %v2123 = vrot.slane %v2066, %v2122
        %v2124 = vsel %vm2114, %v2123, %v2119
        %v2125 = vlaneseq
        %v2126 = vshrl.u32 %v2125, 7
        %v2127 = vsub.s32 %v2104, %v2126
        %v2128 = vrot.slane %v2069, %v2127
        %v2129 = vlaneseq
        %v2130 = vshrl.u32 %v2129, 7
        %v2131 = vsub.s32 %v2109, %v2130
        %v2132 = vrot.slane %v2072, %v2131
        %v2133 = vsel %vm2114, %v2132, %v2128
        %v2134 = vlaneseq
        %v2135 = vshrl.u32 %v2134, 7
        %v2136 = vsub.s32 %v2104, %v2135
        %v2137 = vrot.slane %v2075, %v2136
        %v2138 = vlaneseq
        %v2139 = vshrl.u32 %v2138, 7
        %v2140 = vsub.s32 %v2109, %v2139
        %v2141 = vrot.slane %v2078, %v2140
        %v2142 = vsel %vm2114, %v2141, %v2137
        %v2143 = vlaneseq
        %v2144 = vshrl.u32 %v2143, 7
        %v2145 = vsub.s32 %v2104, %v2144
        %v2146 = vrot.slane %v2081, %v2145
        %v2147 = vlaneseq
        %v2148 = vshrl.u32 %v2147, 7
        %v2149 = vsub.s32 %v2109, %v2148
        %v2150 = vrot.slane %v2084, %v2149
        %v2151 = vsel %vm2114, %v2150, %v2146
        %v2152 = vlaneseq
        %v2153 = vshrl.u32 %v2152, 7
        %v2154 = vsub.s32 %v2104, %v2153
        %v2155 = vrot.slane %v2087, %v2154
        %v2156 = vlaneseq
        %v2157 = vshrl.u32 %v2156, 7
        %v2158 = vsub.s32 %v2109, %v2157
        %v2159 = vrot.slane %v2090, %v2158
        %v2160 = vsel %vm2114, %v2159, %v2155
        %v2161 = vlaneseq
        %v2162 = vshrl.u32 %v2161, 7
        %v2163 = vsub.s32 %v2104, %v2162
        %v2164 = vrot.slane %v2093, %v2163
        %v2165 = vlaneseq
        %v2166 = vshrl.u32 %v2165, 7
        %v2167 = vsub.s32 %v2109, %v2166
        %v2168 = vrot.slane %v2096, %v2167
        %v2169 = vsel %vm2114, %v2168, %v2164
        %v2170 = vlaneseq
        %v2171 = vshrl.u32 %v2170, 7
        %v2172 = vsub.s32 %v2104, %v2171
        %v2173 = vrot.slane %v2099, %v2172
        %v2174 = vlaneseq
        %v2175 = vshrl.u32 %v2174, 7
        %v2176 = vsub.s32 %v2109, %v2175
        %v2177 = vrot.slane %v2102, %v2176
        %v2178 = vsel %vm2114, %v2177, %v2173
        %vm2179 = vcmask 1041409
        %v2180 = vsel %vm2179, %v2124, %v2115
        %vm2181 = vcmask 1042434
        %v2182 = vsel %vm2181, %v2133, %v2180
        %vm2183 = vcmask 1043459
        %v2184 = vsel %vm2183, %v2142, %v2182
        %vm2185 = vcmask 1044484
        %v2186 = vsel %vm2185, %v2151, %v2184
        %vm2187 = vcmask 1045509
        %v2188 = vsel %vm2187, %v2160, %v2186
        %vm2189 = vcmask 1046534
        %v2190 = vsel %vm2189, %v2169, %v2188
        %vm2191 = vcmask 1047559
        %v2192 = vsel %vm2191, %v2178, %v2190
        %vm2194 = vcmask 130048
        %v2195 = vsel %vm2194, %v2192, -inf
        %2196 = vmax.xlane.f32.xlu0 %v2195
        %v2197 = vpop.xlane.xlu0 %2196
        %v2199 = vlaneseq
        %v2200 = vshrl.u32 %v2199, 7
        %v2201 = vsub.s32 0, %v2200
        %v2202 = vrot.slane %v2197, %v2201
        %v2203 = vlaneseq
        %v2204 = vshrl.u32 %v2203, 7
        %v2205 = vsub.s32 1, %v2204
        %v2206 = vrot.slane %v2197, %v2205
        %v2207 = vlaneseq
        %v2208 = vshrl.u32 %v2207, 7
        %v2209 = vsub.s32 2, %v2208
        %v2210 = vrot.slane %v2197, %v2209
        %v2211 = vlaneseq
        %v2212 = vshrl.u32 %v2211, 7
        %v2213 = vsub.s32 3, %v2212
        %v2214 = vrot.slane %v2197, %v2213
        %v2215 = vlaneseq
        %v2216 = vshrl.u32 %v2215, 7
        %v2217 = vsub.s32 4, %v2216
        %v2218 = vrot.slane %v2197, %v2217
        %v2219 = vlaneseq
        %v2220 = vshrl.u32 %v2219, 7
        %v2221 = vsub.s32 5, %v2220
        %v2222 = vrot.slane %v2197, %v2221
        %v2223 = vlaneseq
        %v2224 = vshrl.u32 %v2223, 7
        %v2225 = vsub.s32 6, %v2224
        %v2226 = vrot.slane %v2197, %v2225
        %v2227 = vlaneseq
        %v2228 = vshrl.u32 %v2227, 7
        %v2229 = vsub.s32 7, %v2228
        %v2230 = vrot.slane %v2197, %v2229
        %v2239 = vsub.f32 %v2023, %v2202
        %v2240 = vsub.f32 %v2024, %v2202
        %v2241 = vsub.f32 %v2025, %v2206
        %v2242 = vsub.f32 %v2026, %v2206
        %v2243 = vsub.f32 %v2027, %v2210
        %v2244 = vsub.f32 %v2028, %v2210
        %v2245 = vsub.f32 %v2029, %v2214
        %v2246 = vsub.f32 %v2030, %v2214
        %v2247 = vsub.f32 %v2031, %v2218
        %v2248 = vsub.f32 %v2032, %v2218
        %v2249 = vsub.f32 %v2033, %v2222
        %v2250 = vsub.f32 %v2034, %v2222
        %v2251 = vsub.f32 %v2035, %v2226
        %v2252 = vsub.f32 %v2036, %v2226
        %v2253 = vsub.f32 %v2037, %v2230
        %v2254 = vsub.f32 %v2038, %v2230
        %v2255 = vmul.f32 %v2239, 1.442695
        %v2256 = vpow.pop %v2255
        %v2257 = vmul.f32 %v2240, 1.442695
        %v2258 = vpow.pop %v2257
        %v2259 = vmul.f32 %v2241, 1.442695
        %v2260 = vpow.pop %v2259
        %v2261 = vmul.f32 %v2242, 1.442695
        %v2262 = vpow.pop %v2261
        %v2263 = vmul.f32 %v2243, 1.442695
        %v2264 = vpow.pop %v2263
        %v2265 = vmul.f32 %v2244, 1.442695
        %v2266 = vpow.pop %v2265
        %v2267 = vmul.f32 %v2245, 1.442695
        %v2268 = vpow.pop %v2267
        %v2269 = vmul.f32 %v2246, 1.442695
        %v2270 = vpow.pop %v2269
        %v2271 = vmul.f32 %v2247, 1.442695
        %v2272 = vpow.pop %v2271
        %v2273 = vmul.f32 %v2248, 1.442695
        %v2274 = vpow.pop %v2273
        %v2275 = vmul.f32 %v2249, 1.442695
        %v2276 = vpow.pop %v2275
        %v2277 = vmul.f32 %v2250, 1.442695
        %v2278 = vpow.pop %v2277
        %v2279 = vmul.f32 %v2251, 1.442695
        %v2280 = vpow.pop %v2279
        %v2281 = vmul.f32 %v2252, 1.442695
        %v2282 = vpow.pop %v2281
        %v2283 = vmul.f32 %v2253, 1.442695
        %v2284 = vpow.pop %v2283
        %v2285 = vmul.f32 %v2254, 1.442695
        %v2286 = vpow.pop %v2285
        %2303 = vset.pattern.permute.xlu0 0
        %2304 = vperm.xlu0 %2303, %v2256
        %v2305 = vpop.permute.xlu0 %2304
        %2306 = vset.pattern.permute.xlu0 0
        %2307 = vperm.xlu0 %2306, %v2258
        %v2308 = vpop.permute.xlu0 %2307
        %2309 = vset.pattern.permute.xlu0 0
        %2310 = vperm.xlu0 %2309, %v2260
        %v2311 = vpop.permute.xlu0 %2310
        %2312 = vset.pattern.permute.xlu0 0
        %2313 = vperm.xlu0 %2312, %v2262
        %v2314 = vpop.permute.xlu0 %2313
        %2315 = vset.pattern.permute.xlu0 0
        %2316 = vperm.xlu0 %2315, %v2264
        %v2317 = vpop.permute.xlu0 %2316
        %2318 = vset.pattern.permute.xlu0 0
        %2319 = vperm.xlu0 %2318, %v2266
        %v2320 = vpop.permute.xlu0 %2319
        %2321 = vset.pattern.permute.xlu0 0
        %2322 = vperm.xlu0 %2321, %v2268
        %v2323 = vpop.permute.xlu0 %2322
        %2324 = vset.pattern.permute.xlu0 0
        %2325 = vperm.xlu0 %2324, %v2270
        %v2326 = vpop.permute.xlu0 %2325
        %2327 = vset.pattern.permute.xlu0 0
        %2328 = vperm.xlu0 %2327, %v2272
        %v2329 = vpop.permute.xlu0 %2328
        %2330 = vset.pattern.permute.xlu0 0
        %2331 = vperm.xlu0 %2330, %v2274
        %v2332 = vpop.permute.xlu0 %2331
        %2333 = vset.pattern.permute.xlu0 0
        %2334 = vperm.xlu0 %2333, %v2276
        %v2335 = vpop.permute.xlu0 %2334
        %2336 = vset.pattern.permute.xlu0 0
        %2337 = vperm.xlu0 %2336, %v2278
        %v2338 = vpop.permute.xlu0 %2337
        %2339 = vset.pattern.permute.xlu0 0
        %2340 = vperm.xlu0 %2339, %v2280
        %v2341 = vpop.permute.xlu0 %2340
        %2342 = vset.pattern.permute.xlu0 0
        %2343 = vperm.xlu0 %2342, %v2282
        %v2344 = vpop.permute.xlu0 %2343
        %2345 = vset.pattern.permute.xlu0 0
        %2346 = vperm.xlu0 %2345, %v2284
        %v2347 = vpop.permute.xlu0 %2346
        %2348 = vset.pattern.permute.xlu0 0
        %2349 = vperm.xlu0 %2348, %v2286
        %v2350 = vpop.permute.xlu0 %2349
        %v2351 = vlaneseq
        %v2352 = vshrl.u32 %v2351, 7
        %v2353 = vsub.s32 %v2104, %v2352
        %v2354 = vrot.slane %v2305, %v2353
        %v2355 = vlaneseq
        %v2356 = vshrl.u32 %v2355, 7
        %v2357 = vsub.s32 %v2109, %v2356
        %v2358 = vrot.slane %v2308, %v2357
        %v2359 = vsel %vm2114, %v2358, %v2354
        %v2360 = vlaneseq
        %v2361 = vshrl.u32 %v2360, 7
        %v2362 = vsub.s32 %v2104, %v2361
        %v2363 = vrot.slane %v2311, %v2362
        %v2364 = vlaneseq
        %v2365 = vshrl.u32 %v2364, 7
        %v2366 = vsub.s32 %v2109, %v2365
        %v2367 = vrot.slane %v2314, %v2366
        %v2368 = vsel %vm2114, %v2367, %v2363
        %v2369 = vlaneseq
        %v2370 = vshrl.u32 %v2369, 7
        %v2371 = vsub.s32 %v2104, %v2370
        %v2372 = vrot.slane %v2317, %v2371
        %v2373 = vlaneseq
        %v2374 = vshrl.u32 %v2373, 7
        %v2375 = vsub.s32 %v2109, %v2374
        %v2376 = vrot.slane %v2320, %v2375
        %v2377 = vsel %vm2114, %v2376, %v2372
        %v2378 = vlaneseq
        %v2379 = vshrl.u32 %v2378, 7
        %v2380 = vsub.s32 %v2104, %v2379
        %v2381 = vrot.slane %v2323, %v2380
        %v2382 = vlaneseq
        %v2383 = vshrl.u32 %v2382, 7
        %v2384 = vsub.s32 %v2109, %v2383
        %v2385 = vrot.slane %v2326, %v2384
        %v2386 = vsel %vm2114, %v2385, %v2381
        %v2387 = vlaneseq
        %v2388 = vshrl.u32 %v2387, 7
        %v2389 = vsub.s32 %v2104, %v2388
        %v2390 = vrot.slane %v2329, %v2389
        %v2391 = vlaneseq
        %v2392 = vshrl.u32 %v2391, 7
        %v2393 = vsub.s32 %v2109, %v2392
        %v2394 = vrot.slane %v2332, %v2393
        %v2395 = vsel %vm2114, %v2394, %v2390
        %v2396 = vlaneseq
        %v2397 = vshrl.u32 %v2396, 7
        %v2398 = vsub.s32 %v2104, %v2397
        %v2399 = vrot.slane %v2335, %v2398
        %v2400 = vlaneseq
        %v2401 = vshrl.u32 %v2400, 7
        %v2402 = vsub.s32 %v2109, %v2401
        %v2403 = vrot.slane %v2338, %v2402
        %v2404 = vsel %vm2114, %v2403, %v2399
        %v2405 = vlaneseq
        %v2406 = vshrl.u32 %v2405, 7
        %v2407 = vsub.s32 %v2104, %v2406
        %v2408 = vrot.slane %v2341, %v2407
        %v2409 = vlaneseq
        %v2410 = vshrl.u32 %v2409, 7
        %v2411 = vsub.s32 %v2109, %v2410
        %v2412 = vrot.slane %v2344, %v2411
        %v2413 = vsel %vm2114, %v2412, %v2408
        %v2414 = vlaneseq
        %v2415 = vshrl.u32 %v2414, 7
        %v2416 = vsub.s32 %v2104, %v2415
        %v2417 = vrot.slane %v2347, %v2416
        %v2418 = vlaneseq
        %v2419 = vshrl.u32 %v2418, 7
        %v2420 = vsub.s32 %v2109, %v2419
        %v2421 = vrot.slane %v2350, %v2420
        %v2422 = vsel %vm2114, %v2421, %v2417
        %v2423 = vsel %vm2179, %v2368, %v2359
        %v2424 = vsel %vm2181, %v2377, %v2423
        %v2425 = vsel %vm2183, %v2386, %v2424
        %v2426 = vsel %vm2185, %v2395, %v2425
        %v2427 = vsel %vm2187, %v2404, %v2426
        %v2428 = vsel %vm2189, %v2413, %v2427
        %v2429 = vsel %vm2191, %v2422, %v2428
        %v2431 = vsel %vm2194, %v2429, 0.0
        %2432 = vadd.xlane.f32.xlu0 %v2431
        %v2433 = vpop.xlane.xlu0 %2432
        %v2434 = vrcp.pop %v2433
        %v2435 = vmul.f32 %v2433, %v2434
        %v2436 = vsub.f32 2.0, %v2435
        %v2437 = vmul.f32 %v2434, %v2436
        %v2439 = vlaneseq
        %v2440 = vshrl.u32 %v2439, 7
        %v2441 = vsub.s32 0, %v2440
        %v2442 = vrot.slane %v2437, %v2441
        %v2443 = vlaneseq
        %v2444 = vshrl.u32 %v2443, 7
        %v2445 = vsub.s32 1, %v2444
        %v2446 = vrot.slane %v2437, %v2445
        %v2447 = vlaneseq
        %v2448 = vshrl.u32 %v2447, 7
        %v2449 = vsub.s32 2, %v2448
        %v2450 = vrot.slane %v2437, %v2449
        %v2451 = vlaneseq
        %v2452 = vshrl.u32 %v2451, 7
        %v2453 = vsub.s32 3, %v2452
        %v2454 = vrot.slane %v2437, %v2453
        %v2455 = vlaneseq
        %v2456 = vshrl.u32 %v2455, 7
        %v2457 = vsub.s32 4, %v2456
        %v2458 = vrot.slane %v2437, %v2457
        %v2459 = vlaneseq
        %v2460 = vshrl.u32 %v2459, 7
        %v2461 = vsub.s32 5, %v2460
        %v2462 = vrot.slane %v2437, %v2461
        %v2463 = vlaneseq
        %v2464 = vshrl.u32 %v2463, 7
        %v2465 = vsub.s32 6, %v2464
        %v2466 = vrot.slane %v2437, %v2465
        %v2467 = vlaneseq
        %v2468 = vshrl.u32 %v2467, 7
        %v2469 = vsub.s32 7, %v2468
        %v2470 = vrot.slane %v2437, %v2469
        %v2479 = vmul.f32 %v2256, %v2442
        %v2480 = vmul.f32 %v2258, %v2442
        %v2481 = vmul.f32 %v2260, %v2446
        %v2482 = vmul.f32 %v2262, %v2446
        %v2483 = vmul.f32 %v2264, %v2450
        %v2484 = vmul.f32 %v2266, %v2450
        %v2485 = vmul.f32 %v2268, %v2454
        %v2486 = vmul.f32 %v2270, %v2454
        %v2487 = vmul.f32 %v2272, %v2458
        %v2488 = vmul.f32 %v2274, %v2458
        %v2489 = vmul.f32 %v2276, %v2462
        %v2490 = vmul.f32 %v2278, %v2462
        %v2491 = vmul.f32 %v2280, %v2466
        %v2492 = vmul.f32 %v2282, %v2466
        %v2493 = vmul.f32 %v2284, %v2470
        %v2494 = vmul.f32 %v2286, %v2470
        %2511 = vset.pattern.permute.xlu0 0
        %2512 = vperm.xlu0 %2511, %v2479
        %v2513 = vpop.permute.xlu0 %2512
        %2514 = vset.pattern.permute.xlu0 0
        %2515 = vperm.xlu0 %2514, %v2480
        %v2516 = vpop.permute.xlu0 %2515
        %2517 = vset.pattern.permute.xlu0 0
        %2518 = vperm.xlu0 %2517, %v2481
        %v2519 = vpop.permute.xlu0 %2518
        %2520 = vset.pattern.permute.xlu0 0
        %2521 = vperm.xlu0 %2520, %v2482
        %v2522 = vpop.permute.xlu0 %2521
        %2523 = vset.pattern.permute.xlu0 0
        %2524 = vperm.xlu0 %2523, %v2483
        %v2525 = vpop.permute.xlu0 %2524
        %2526 = vset.pattern.permute.xlu0 0
        %2527 = vperm.xlu0 %2526, %v2484
        %v2528 = vpop.permute.xlu0 %2527
        %2529 = vset.pattern.permute.xlu0 0
        %2530 = vperm.xlu0 %2529, %v2485
        %v2531 = vpop.permute.xlu0 %2530
        %2532 = vset.pattern.permute.xlu0 0
        %2533 = vperm.xlu0 %2532, %v2486
        %v2534 = vpop.permute.xlu0 %2533
        %2535 = vset.pattern.permute.xlu0 0
        %2536 = vperm.xlu0 %2535, %v2487
        %v2537 = vpop.permute.xlu0 %2536
        %2538 = vset.pattern.permute.xlu0 0
        %2539 = vperm.xlu0 %2538, %v2488
        %v2540 = vpop.permute.xlu0 %2539
        %2541 = vset.pattern.permute.xlu0 0
        %2542 = vperm.xlu0 %2541, %v2489
        %v2543 = vpop.permute.xlu0 %2542
        %2544 = vset.pattern.permute.xlu0 0
        %2545 = vperm.xlu0 %2544, %v2490
        %v2546 = vpop.permute.xlu0 %2545
        %2547 = vset.pattern.permute.xlu0 0
        %2548 = vperm.xlu0 %2547, %v2491
        %v2549 = vpop.permute.xlu0 %2548
        %2550 = vset.pattern.permute.xlu0 0
        %2551 = vperm.xlu0 %2550, %v2492
        %v2552 = vpop.permute.xlu0 %2551
        %2553 = vset.pattern.permute.xlu0 0
        %2554 = vperm.xlu0 %2553, %v2493
        %v2555 = vpop.permute.xlu0 %2554
        %2556 = vset.pattern.permute.xlu0 0
        %2557 = vperm.xlu0 %2556, %v2494
        %v2558 = vpop.permute.xlu0 %2557
        %v2559 = vlaneseq
        %v2560 = vshrl.u32 %v2559, 7
        %v2561 = vsub.s32 %v2104, %v2560
        %v2562 = vrot.slane %v2513, %v2561
        %v2563 = vlaneseq
        %v2564 = vshrl.u32 %v2563, 7
        %v2565 = vsub.s32 %v2109, %v2564
        %v2566 = vrot.slane %v2516, %v2565
        %v2567 = vsel %vm2114, %v2566, %v2562
        %v2568 = vlaneseq
        %v2569 = vshrl.u32 %v2568, 7
        %v2570 = vsub.s32 %v2104, %v2569
        %v2571 = vrot.slane %v2519, %v2570
        %v2572 = vlaneseq
        %v2573 = vshrl.u32 %v2572, 7
        %v2574 = vsub.s32 %v2109, %v2573
        %v2575 = vrot.slane %v2522, %v2574
        %v2576 = vsel %vm2114, %v2575, %v2571
        %v2577 = vlaneseq
        %v2578 = vshrl.u32 %v2577, 7
        %v2579 = vsub.s32 %v2104, %v2578
        %v2580 = vrot.slane %v2525, %v2579
        %v2581 = vlaneseq
        %v2582 = vshrl.u32 %v2581, 7
        %v2583 = vsub.s32 %v2109, %v2582
        %v2584 = vrot.slane %v2528, %v2583
        %v2585 = vsel %vm2114, %v2584, %v2580
        %v2586 = vlaneseq
        %v2587 = vshrl.u32 %v2586, 7
        %v2588 = vsub.s32 %v2104, %v2587
        %v2589 = vrot.slane %v2531, %v2588
        %v2590 = vlaneseq
        %v2591 = vshrl.u32 %v2590, 7
        %v2592 = vsub.s32 %v2109, %v2591
        %v2593 = vrot.slane %v2534, %v2592
        %v2594 = vsel %vm2114, %v2593, %v2589
        %v2595 = vlaneseq
        %v2596 = vshrl.u32 %v2595, 7
        %v2597 = vsub.s32 %v2104, %v2596
        %v2598 = vrot.slane %v2537, %v2597
        %v2599 = vlaneseq
        %v2600 = vshrl.u32 %v2599, 7
        %v2601 = vsub.s32 %v2109, %v2600
        %v2602 = vrot.slane %v2540, %v2601
        %v2603 = vsel %vm2114, %v2602, %v2598
        %v2604 = vlaneseq
        %v2605 = vshrl.u32 %v2604, 7
        %v2606 = vsub.s32 %v2104, %v2605
        %v2607 = vrot.slane %v2543, %v2606
        %v2608 = vlaneseq
        %v2609 = vshrl.u32 %v2608, 7
        %v2610 = vsub.s32 %v2109, %v2609
        %v2611 = vrot.slane %v2546, %v2610
        %v2612 = vsel %vm2114, %v2611, %v2607
        %v2613 = vlaneseq
        %v2614 = vshrl.u32 %v2613, 7
        %v2615 = vsub.s32 %v2104, %v2614
        %v2616 = vrot.slane %v2549, %v2615
        %v2617 = vlaneseq
        %v2618 = vshrl.u32 %v2617, 7
        %v2619 = vsub.s32 %v2109, %v2618
        %v2620 = vrot.slane %v2552, %v2619
        %v2621 = vsel %vm2114, %v2620, %v2616
        %v2622 = vlaneseq
        %v2623 = vshrl.u32 %v2622, 7
        %v2624 = vsub.s32 %v2104, %v2623
        %v2625 = vrot.slane %v2555, %v2624
        %v2626 = vlaneseq
        %v2627 = vshrl.u32 %v2626, 7
        %v2628 = vsub.s32 %v2109, %v2627
        %v2629 = vrot.slane %v2558, %v2628
        %v2630 = vsel %vm2114, %v2629, %v2625
        %v2631 = vsel %vm2179, %v2576, %v2567
        %v2632 = vsel %vm2181, %v2585, %v2631
        %v2633 = vsel %vm2183, %v2594, %v2632
        %v2634 = vsel %vm2185, %v2603, %v2633
        %v2635 = vsel %vm2187, %v2612, %v2634
        %v2636 = vsel %vm2189, %v2621, %v2635
        %v2637 = vsel %vm2191, %v2630, %v2636
        %2639 = vst.msk [vmem:[%s541] sm:$0xff] %vm2194, %v2637
        %v2640 = vld [vmem:[%s462] sm:$0xff]
        %v2641 = vld [vmem:[%s462 + $0x8] sm:$0xff]
        %v2642 = vld [vmem:[%s462 + $0x10] sm:$0xff]
        %v2643 = vld [vmem:[%s462 + $0x18] sm:$0xff]
        %v2644 = vld [vmem:[%s462 + $0x20] sm:$0xff]
        %v2645 = vld [vmem:[%s462 + $0x28] sm:$0xff]
        %v2646 = vld [vmem:[%s462 + $0x30] sm:$0xff]
        %v2647 = vld [vmem:[%s462 + $0x38] sm:$0xff]
        %v2648 = vld [vmem:[%s462 + $0x40] sm:$0xff]
        %v2649 = vld [vmem:[%s462 + $0x48] sm:$0xff]
        %v2650 = vld [vmem:[%s462 + $0x50] sm:$0xff]
        %v2651 = vld [vmem:[%s462 + $0x58] sm:$0xff]
        %v2652 = vld [vmem:[%s462 + $0x60] sm:$0xff]
        %v2653 = vld [vmem:[%s462 + $0x68] sm:$0xff]
        %v2654 = vld [vmem:[%s462 + $0x70] sm:$0xff]
        %v2655 = vld [vmem:[%s462 + $0x78] sm:$0xff]
        %v2672 = vmul.f32 %v2513, %v2640
        %v2673 = vmul.f32 %v2516, %v2641
        %v2674 = vmul.f32 %v2519, %v2642
        %v2675 = vmul.f32 %v2522, %v2643
        %v2676 = vmul.f32 %v2525, %v2644
        %v2677 = vmul.f32 %v2528, %v2645
        %v2678 = vmul.f32 %v2531, %v2646
        %v2679 = vmul.f32 %v2534, %v2647
        %v2680 = vmul.f32 %v2537, %v2648
        %v2681 = vmul.f32 %v2540, %v2649
        %v2682 = vmul.f32 %v2543, %v2650
        %v2683 = vmul.f32 %v2546, %v2651
        %v2684 = vmul.f32 %v2549, %v2652
        %v2685 = vmul.f32 %v2552, %v2653
        %v2686 = vmul.f32 %v2555, %v2654
        %v2687 = vmul.f32 %v2558, %v2655
        %v2688 = vsel %vm559, %v2672, 0.0
        %v2689 = vsel %vm559, %v2673, 0.0
        %v2690 = vadd.f32 %v2688, %v2689
        %v2691 = vrot.slane %v2690, 4
        %v2692 = vadd.f32 %v2690, %v2691
        %v2693 = vrot.slane %v2692, 2
        %v2694 = vadd.f32 %v2692, %v2693
        %v2695 = vrot.slane %v2694, 1
        %v2696 = vadd.f32 %v2694, %v2695
        %v2697 = vsel %vm559, %v2674, 0.0
        %v2698 = vsel %vm559, %v2675, 0.0
        %v2699 = vadd.f32 %v2697, %v2698
        %v2700 = vrot.slane %v2699, 4
        %v2701 = vadd.f32 %v2699, %v2700
        %v2702 = vrot.slane %v2701, 2
        %v2703 = vadd.f32 %v2701, %v2702
        %v2704 = vrot.slane %v2703, 1
        %v2705 = vadd.f32 %v2703, %v2704
        %v2706 = vsel %vm559, %v2676, 0.0
        %v2707 = vsel %vm559, %v2677, 0.0
        %v2708 = vadd.f32 %v2706, %v2707
        %v2709 = vrot.slane %v2708, 4
        %v2710 = vadd.f32 %v2708, %v2709
        %v2711 = vrot.slane %v2710, 2
        %v2712 = vadd.f32 %v2710, %v2711
        %v2713 = vrot.slane %v2712, 1
        %v2714 = vadd.f32 %v2712, %v2713
        %v2715 = vsel %vm559, %v2678, 0.0
        %v2716 = vsel %vm559, %v2679, 0.0
        %v2717 = vadd.f32 %v2715, %v2716
        %v2718 = vrot.slane %v2717, 4
        %v2719 = vadd.f32 %v2717, %v2718
        %v2720 = vrot.slane %v2719, 2
        %v2721 = vadd.f32 %v2719, %v2720
        %v2722 = vrot.slane %v2721, 1
        %v2723 = vadd.f32 %v2721, %v2722
        %v2724 = vsel %vm559, %v2680, 0.0
        %v2725 = vsel %vm559, %v2681, 0.0
        %v2726 = vadd.f32 %v2724, %v2725
        %v2727 = vrot.slane %v2726, 4
        %v2728 = vadd.f32 %v2726, %v2727
        %v2729 = vrot.slane %v2728, 2
        %v2730 = vadd.f32 %v2728, %v2729
        %v2731 = vrot.slane %v2730, 1
        %v2732 = vadd.f32 %v2730, %v2731
        %v2733 = vsel %vm559, %v2682, 0.0
        %v2734 = vsel %vm559, %v2683, 0.0
        %v2735 = vadd.f32 %v2733, %v2734
        %v2736 = vrot.slane %v2735, 4
        %v2737 = vadd.f32 %v2735, %v2736
        %v2738 = vrot.slane %v2737, 2
        %v2739 = vadd.f32 %v2737, %v2738
        %v2740 = vrot.slane %v2739, 1
        %v2741 = vadd.f32 %v2739, %v2740
        %v2742 = vsel %vm559, %v2684, 0.0
        %v2743 = vsel %vm559, %v2685, 0.0
        %v2744 = vadd.f32 %v2742, %v2743
        %v2745 = vrot.slane %v2744, 4
        %v2746 = vadd.f32 %v2744, %v2745
        %v2747 = vrot.slane %v2746, 2
        %v2748 = vadd.f32 %v2746, %v2747
        %v2749 = vrot.slane %v2748, 1
        %v2750 = vadd.f32 %v2748, %v2749
        %v2751 = vsel %vm559, %v2686, 0.0
        %v2752 = vsel %vm559, %v2687, 0.0
        %v2753 = vadd.f32 %v2751, %v2752
        %v2754 = vrot.slane %v2753, 4
        %v2755 = vadd.f32 %v2753, %v2754
        %v2756 = vrot.slane %v2755, 2
        %v2757 = vadd.f32 %v2755, %v2756
        %v2758 = vrot.slane %v2757, 1
        %v2759 = vadd.f32 %v2757, %v2758
        %v2768 = vsel %vm2179, %v2705, %v2696
        %v2769 = vsel %vm2181, %v2714, %v2768
        %v2770 = vsel %vm2183, %v2723, %v2769
        %v2771 = vsel %vm2185, %v2732, %v2770
        %v2772 = vsel %vm2187, %v2741, %v2771
        %v2773 = vsel %vm2189, %v2750, %v2772
        %v2774 = vsel %vm2191, %v2759, %v2773
        %2776 = vst.msk [vmem:[%s527] sm:$0xff] %vm559, %v2774
        %p2777 = scmp.lt.s32.totalorder %s33, 2
        %s2778 = scalar_select %p2777, %s33, 2
        %s2779 = smul.addr %s2778, 8
        %s2780 = scalar_lea.vmem %s10, %s2779
        %s2781 = sand.u32 %s302, 1
        %s2782 = scalar_lea.sflag [#allocation4], %s2781
        %s2783 = sand.u32 %s302, 1
        %s2784 = smul.addr %s2783, 8
        %s2785 = scalar_lea.vmem [#allocation10], %s2784
        // Predicated region
        $region77: #{tpu_custom_call.1} parent=59 // pred_check
          %p2786 = pneg %p286
        $region78: #{tpu_custom_call.1} parent=59 // pred_check_branch
          %2788 = sbr.rel (%p2786) target = $region80
        $region79: #{tpu_custom_call.1} parent=59 // pred_region
          _
        $region80: #{tpu_custom_call.1} parent=59 // pred_fallthru
          _
        // Predicated region
        $region81: #{tpu_custom_call.1} parent=59 // pred_check
          %p2789 = pneg %p312
        $region82: #{tpu_custom_call.1} parent=59 // pred_check_branch
          %2791 = sbr.rel (%p2789) target = $region84
        $region83: #{tpu_custom_call.1} parent=59 // pred_region
          %s2793 = ssub.s32 128, 128
          %2794 = vsyncadd %s2782, %s2793
          %s2795 = smul.addr %s33, 128
          %s2796 = scalar_lea.hbm %s11, %s2795
          %s2798 = sshll.u32 %s2785, 4
          %s2799 = int_to_ptr.vmem [resolvable:$true] %s2798
          %2801 = dma.vmem_to_hbm [thread:$0]  %s2799, 128, %s2796, %s2782
        $region84: #{tpu_custom_call.1} parent=59 // pred_fallthru
          _
      $region60: #{tpu_custom_call.1} parent=5 // pred_fallthru
        _
      %p2802 = scmp.le.s32.totalorder 2, %s28
      // Predicated region
      $region85: #{tpu_custom_call.1} parent=5 // pred_check
        %p2803 = pneg %p2802
      $region86: #{tpu_custom_call.1} parent=5 // pred_check_branch
        %2805 = sbr.rel (%p2803) target = $region88
      $region87: #{tpu_custom_call.1} parent=5 // pred_region
        %s2806 = ssub.s32 %s28, 2
        // Predicated region
        $region89: #{tpu_custom_call.1} parent=87 // pred_check
          %p2807 = pneg %p292
        $region90: #{tpu_custom_call.1} parent=87 // pred_check_branch
          %2809 = sbr.rel (%p2807) target = $region92
        $region91: #{tpu_custom_call.1} parent=87 // pred_region
          %p2810 = scmp.lt.s32.totalorder %s34, 2
          %s2811 = scalar_select %p2810, %s34, 2
          %s2812 = smul.addr %s2811, 8
          %s2813 = scalar_lea.vmem %s10, %s2812
        $region92: #{tpu_custom_call.1} parent=87 // pred_fallthru
          _
        // Predicated region
        $region93: #{tpu_custom_call.1} parent=87 // pred_check
          %p2814 = pneg %p318
        $region94: #{tpu_custom_call.1} parent=87 // pred_check_branch
          %2816 = sbr.rel (%p2814) target = $region96
        $region95: #{tpu_custom_call.1} parent=87 // pred_region
          %s2817 = sand.u32 %s303, 1
          %s2818 = scalar_lea.sflag [#allocation4], %s2817
          %s2819 = sand.u32 %s303, 1
          %s2820 = smul.addr %s2819, 8
          %s2821 = scalar_lea.vmem [#allocation10], %s2820
          %2822 = dma.done %s2818, 128
        $region96: #{tpu_custom_call.1} parent=87 // pred_fallthru
          _
      $region88: #{tpu_custom_call.1} parent=5 // pred_fallthru
        _
    $region6: #{tpu_custom_call.1} parent=1 // loop_footer
      %s32 = sadd.s32 1, %s28
    $region7: #{tpu_custom_call.1} parent=1 // loop_footer_branch
      %27 = sbr.rel target = $region3
    $region8: #{tpu_custom_call.1} parent=1 // loop_exit
      _
    %2823 = vsyncpa [#allocation3], 1
    %s2824 = scalar_lea.sflag [#allocation3], 1
    %2825 = vsyncpa %s2824, 1
    %2826 = vsyncpa [#allocation7], 1
    %s2827 = scalar_lea.sflag [#allocation7], 1
    %2828 = vsyncpa %s2827, 1
    %2829 = vsyncpa [#allocation4], 1
    %s2830 = scalar_lea.sflag [#allocation4], 1
    %2831 = vsyncpa %s2830, 1
    %2832 = vsyncpa [#allocation5], 1
    %s2833 = scalar_lea.sflag [#allocation5], 1
    %2834 = vsyncpa %s2833, 1

</llo_original>
